<compile_context>
chip_gen: v7x
topology: tpu7x:2x2x1
jax: 0.10.0
libtpu: 0.0.40
codegen_flags: <defaults>
</compile_context>

<pallas_src>
import functools
import math

import jax
import jax.numpy as jnp
from jax import lax
from jax.experimental import pallas as pl
from jax.experimental.pallas import tpu as pltpu


# ---------------------------------------------------------------------------
# Pallas kernel
# ---------------------------------------------------------------------------
def _mha_kernel(x_ref, wqkv_ref, bqkv_ref, wo_ref, bo_ref, o_ref, *, n_heads):
    Bt, S, D = x_ref.shape                       # static block shape
    hs = D // n_heads
    scale = 1.0 / math.sqrt(hs)
    R = Bt * S                                   # rows fed to the MXU per step

    # (Bt, S, D) -> (R, D): collapsing leading dims is layout-trivial.
    x = x_ref[...].reshape(R, D).astype(jnp.bfloat16)

    # Fused Q/K/V projection: one lane-dense (R, D) @ (D, 3D) bf16 MXU matmul,
    # f32 accumulation.
    qkv = jnp.dot(x, wqkv_ref[...], preferred_element_type=jnp.float32)
    qkv = qkv + bqkv_ref[...]                    # (R, 3D) f32

    wo = wo_ref[...]                             # (D, D) bf16

    # Per-head attention with W_o folded in.  n_heads is small & static, so a
    # Python unroll is fine.
    # TODO(synk): if Bt*n_heads ever gets large, switch this to
    # lax.fori_loop(..., unroll=True) to bound vreg live ranges.
    acc = jnp.zeros((R, D), jnp.float32)
    for h in range(n_heads):
        lo = h * hs
        qh = (qkv[:, lo:lo + hs] * scale).reshape(Bt, S, hs)
        kh = qkv[:, D + lo:D + lo + hs].reshape(Bt, S, hs)
        vh = qkv[:, 2 * D + lo:2 * D + lo + hs].reshape(Bt, S, hs)

        # Q @ K^T per batch element (batched over Bt, contract head dim).
        s = jnp.einsum("bqd,bkd->bqk", qh, kh,
                       preferred_element_type=jnp.float32)       # (Bt, S, S)
        s = s - jnp.max(s, axis=-1, keepdims=True)
        p = jnp.exp(s)                                           # unnormalized
        inv = pl.reciprocal(jnp.sum(p, axis=-1, keepdims=True), approx=True)

        ctx = jnp.einsum("bqk,bkd->bqd", p, vh,
                         preferred_element_type=jnp.float32) * inv   # (Bt,S,hs)

        # Fold W_o: sublane slice of W_o (free), lane-dense (R, D) output.
        acc = acc + jnp.dot(ctx.reshape(R, hs).astype(jnp.bfloat16),
                            wo[lo:lo + hs, :],
                            preferred_element_type=jnp.float32)

    out = acc + bo_ref[...]
    o_ref[...] = out.reshape(Bt, S, D).astype(o_ref.dtype)


def _pick_block_batch(B, S):
    """Largest divisor of B giving >=~256 rows/step while keeping >=2 grid
    steps (so v7x's two TensorCores both get work) and bounded VMEM."""
    target_rows, cap_rows = 256, 512
    best = 1
    for bt in range(1, B + 1):
        if B % bt:
            continue
        if bt > 1 and bt * S > cap_rows:
            break
        if B >= 2 and B // bt < 2:        # keep at least 2 parallel steps
            break
        best = bt
        if bt * S >= target_rows:
            break
    return best


@functools.partial(jax.jit, static_argnames=("n_heads",))
def multi_head_attention(x, wqkv, bqkv, wo, bo, *, n_heads):
    B, S, D = x.shape
    assert D % n_heads == 0, "d_model must be divisible by n_heads"
    assert S % 8 == 0, "sequence length must be a multiple of 8 (sublanes)"
    assert D % 128 == 0, "d_model must be a multiple of 128 (lane-dense)"

    bt = _pick_block_batch(B, S)
    grid = (B // bt,)

    # Store weights as bf16 (MXU-native); biases / accumulation stay f32.
    wqkv_bf = wqkv.astype(jnp.bfloat16)
    wo_bf = wo.astype(jnp.bfloat16)

    kernel = functools.partial(_mha_kernel, n_heads=n_heads)
    return pl.pallas_call(
        kernel,
        out_shape=jax.ShapeDtypeStruct((B, S, D), x.dtype),
        grid=grid,
        in_specs=[
            pl.BlockSpec((bt, S, D), lambda i: (i, 0, 0)),       # x tile
            pl.BlockSpec((D, 3 * D), lambda i: (0, 0)),          # fused QKV W
            pl.BlockSpec((1, 3 * D), lambda i: (0, 0)),          # fused QKV b
            pl.BlockSpec((D, D), lambda i: (0, 0)),              # W_o
            pl.BlockSpec((1, D), lambda i: (0, 0)),              # b_o
        ],
        out_specs=pl.BlockSpec((bt, S, D), lambda i: (i, 0, 0)),
        compiler_params=pltpu.CompilerParams(
            dimension_semantics=("parallel",)),
    )(x, wqkv_bf, bqkv, wo_bf, bo)


# ---------------------------------------------------------------------------
# Pure-JAX reference (mirrors the PyTorch forward exactly) for verification
# ---------------------------------------------------------------------------
def mha_reference(x, wqkv, bqkv, wo, bo, n_heads):
    B, S, D = x.shape
    hs = D // n_heads
    hp = lax.Precision.HIGHEST
    qkv = jnp.einsum("bsd,de->bse", x, wqkv, precision=hp) + bqkv[0]
    q, k, v = qkv[..., :D], qkv[..., D:2 * D], qkv[..., 2 * D:]
    outs = []
    for h in range(n_heads):
        sl = slice(h * hs, (h + 1) * hs)
        qh, kh, vh = q[..., sl], k[..., sl], v[..., sl]
        s = jnp.einsum("bqd,bkd->bqk", qh, kh, precision=hp) / math.sqrt(hs)
        p = jax.nn.softmax(s, axis=-1)
        outs.append(jnp.einsum("bqk,bkd->bqd", p, vh, precision=hp))
    ctx = jnp.concatenate(outs, axis=-1)
    return jnp.einsum("bsd,de->bse", ctx, wo, precision=hp) + bo[0]


if __name__ == "__main__":
    D_MODEL, N_HEADS = 128, 4                    # head_size = 32
    key = jax.random.PRNGKey(0)
    kx, kqkv, kbqkv, kwo, kbo, kx2 = jax.random.split(key, 6)

    # Fused per-head Q/K/V weights laid out as [Q heads | K heads | V heads]
    # (each D_MODEL-wide block is the concat over heads, matching torch.cat).
    wqkv = jax.random.normal(kqkv, (D_MODEL, 3 * D_MODEL), jnp.float32) / math.sqrt(D_MODEL)
    bqkv = jax.random.normal(kbqkv, (1, 3 * D_MODEL), jnp.float32) * 0.02
    wo = jax.random.normal(kwo, (D_MODEL, D_MODEL), jnp.float32) / math.sqrt(D_MODEL)
    bo = jax.random.normal(kbo, (1, D_MODEL), jnp.float32) * 0.02

    # Small shape matching the module (B=2) + a larger batch to exercise the
    # batch-blocked grid (Bt > 1).
    for B, S, kk in ((2, 16, kx), (8, 16, kx2)):
        x = jax.random.normal(kk, (B, S, D_MODEL), jnp.float32)
        out = multi_head_attention(x, wqkv, bqkv, wo, bo, n_heads=N_HEADS)
        out = jax.block_until_ready(out)
        ref = mha_reference(x, wqkv, bqkv, wo, bo, N_HEADS)
        assert out.shape == (B, S, D_MODEL), out.shape
        assert out.dtype == jnp.float32
        err = float(jnp.max(jnp.abs(out - ref)))
        assert jnp.allclose(out, ref, atol=2e-2, rtol=2e-2), err

    print("KERNEL_OK")
</pallas_src>

<mosaic_0001>
module attributes {stable_mosaic.version = 11 : i64} {
  func.func @_mha_kernel(%arg0: i32, %arg1: memref<1x16x128xf32, #tpu.memory_space<vmem>>, %arg2: memref<128x384xbf16, #tpu.memory_space<vmem>>, %arg3: memref<1x384xf32, #tpu.memory_space<vmem>>, %arg4: memref<128x128xbf16, #tpu.memory_space<vmem>>, %arg5: memref<1x128xf32, #tpu.memory_space<vmem>>, %arg6: memref<1x16x128xf32, #tpu.memory_space<vmem>>) attributes {dimension_semantics = [#tpu.dimension_semantics<parallel>], iteration_bounds = array<i64: 2>, scalar_prefetch = 0 : i64, scratch_operands = 0 : i64, tpu.core_type = #tpu.core_type<tc>, window_params = [{transform_indices = @transform_0, window_bounds = array<i64: 1, 16, 128>}, {pipeline_mode = #tpu.pipeline_mode<synchronous>, transform_indices = @transform_1, window_bounds = array<i64: 128, 384>}, {pipeline_mode = #tpu.pipeline_mode<synchronous>, transform_indices = @transform_2, window_bounds = array<i64: 1, 384>}, {pipeline_mode = #tpu.pipeline_mode<synchronous>, transform_indices = @transform_3, window_bounds = array<i64: 128, 128>}, {pipeline_mode = #tpu.pipeline_mode<synchronous>, transform_indices = @transform_4, window_bounds = array<i64: 1, 128>}, {transform_indices = @transform_5, window_bounds = array<i64: 1, 16, 128>}]} {
    %c0 = arith.constant 0 : index
    %c0_0 = arith.constant 0 : index
    %c0_1 = arith.constant 0 : index
    %0 = vector.load %arg1[%c0, %c0_0, %c0_1] : memref<1x16x128xf32, #tpu.memory_space<vmem>>, vector<1x16x128xf32>
    %1 = vector.shape_cast %0 : vector<1x16x128xf32> to vector<16x128xf32>
    %2 = arith.truncf %1 : vector<16x128xf32> to vector<16x128xbf16>
    %c0_2 = arith.constant 0 : index
    %c0_3 = arith.constant 0 : index
    %3 = vector.load %arg2[%c0_2, %c0_3] : memref<128x384xbf16, #tpu.memory_space<vmem>>, vector<128x384xbf16>
    %cst = arith.constant dense<0.000000e+00> : vector<16x384xf32>
    %4 = tpu.matmul %2, %3, %cst {dimension_numbers = #tpu.dot_dimension_numbers<[1], [0], [0], [1], [0, 0, 1, 1], [], []>} : vector<16x128xbf16>, vector<128x384xbf16>, vector<16x384xf32> -> vector<16x384xf32>
    %c0_4 = arith.constant 0 : index
    %c0_5 = arith.constant 0 : index
    %5 = vector.load %arg3[%c0_4, %c0_5] : memref<1x384xf32, #tpu.memory_space<vmem>>, vector<1x384xf32>
    %6 = vector.broadcast %5 : vector<1x384xf32> to vector<16x384xf32>
    %7 = arith.addf %4, %6 : vector<16x384xf32>
    %c0_6 = arith.constant 0 : index
    %c0_7 = arith.constant 0 : index
    %8 = vector.load %arg4[%c0_6, %c0_7] : memref<128x128xbf16, #tpu.memory_space<vmem>>, vector<128x128xbf16>
    %cst_8 = arith.constant 0.000000e+00 : f32
    %9 = vector.broadcast %cst_8 : f32 to vector<16x128xf32>
    %10 = vector.extract_strided_slice %7 {offsets = [0, 0], sizes = [16, 32], strides = [1, 1]} : vector<16x384xf32> to vector<16x32xf32>
    %cst_9 = arith.constant 0.176776692 : f32
    %11 = vector.broadcast %cst_9 : f32 to vector<16x32xf32>
    %12 = arith.mulf %10, %11 : vector<16x32xf32>
    %13 = vector.shape_cast %12 : vector<16x32xf32> to vector<1x16x32xf32>
    %14 = vector.extract_strided_slice %7 {offsets = [0, 128], sizes = [16, 32], strides = [1, 1]} : vector<16x384xf32> to vector<16x32xf32>
    %15 = vector.shape_cast %14 : vector<16x32xf32> to vector<1x16x32xf32>
    %16 = vector.extract_strided_slice %7 {offsets = [0, 256], sizes = [16, 32], strides = [1, 1]} : vector<16x384xf32> to vector<16x32xf32>
    %17 = vector.shape_cast %16 : vector<16x32xf32> to vector<1x16x32xf32>
    "tpu.trace_start"() <{level = 10 : i32, message = "bqd,bkd->bqk"}> : () -> ()
    %cst_10 = arith.constant dense<0.000000e+00> : vector<1x16x16xf32>
    %18 = tpu.matmul %13, %15, %cst_10 {dimension_numbers = #tpu.dot_dimension_numbers<[2], [2], [1], [1], [0, 0, 0, 1, 1, 1], [0], [0]>} : vector<1x16x32xf32>, vector<1x16x32xf32>, vector<1x16x16xf32> -> vector<1x16x16xf32>
    "tpu.trace_stop"() : () -> ()
    %cst_11 = arith.constant dense<0xFF800000> : vector<1x16xf32>
    %19 = vector.multi_reduction <maximumf>, %18, %cst_11 [2] : vector<1x16x16xf32> to vector<1x16xf32>
    %20 = vector.shape_cast %19 : vector<1x16xf32> to vector<1x16x1xf32>
    %21 = vector.broadcast %20 : vector<1x16x1xf32> to vector<1x16x16xf32>
    %22 = arith.subf %18, %21 : vector<1x16x16xf32>
    %23 = math.exp %22 : vector<1x16x16xf32>
    %cst_12 = arith.constant dense<0.000000e+00> : vector<1x16xf32>
    %24 = vector.multi_reduction <add>, %23, %cst_12 [2] : vector<1x16x16xf32> to vector<1x16xf32>
    %25 = vector.shape_cast %24 : vector<1x16xf32> to vector<1x16x1xf32>
    %26 = tpu.reciprocal %25 {approx = true} : vector<1x16x1xf32> -> vector<1x16x1xf32>
    "tpu.trace_start"() <{level = 10 : i32, message = "bqk,bkd->bqd"}> : () -> ()
    %cst_13 = arith.constant dense<0.000000e+00> : vector<1x16x32xf32>
    %27 = tpu.matmul %23, %17, %cst_13 {dimension_numbers = #tpu.dot_dimension_numbers<[2], [1], [1], [2], [0, 0, 0, 1, 1, 2], [0], [0]>} : vector<1x16x16xf32>, vector<1x16x32xf32>, vector<1x16x32xf32> -> vector<1x16x32xf32>
    "tpu.trace_stop"() : () -> ()
    %28 = vector.broadcast %26 : vector<1x16x1xf32> to vector<1x16x32xf32>
    %29 = arith.mulf %27, %28 : vector<1x16x32xf32>
    %30 = vector.shape_cast %29 : vector<1x16x32xf32> to vector<16x32xf32>
    %31 = arith.truncf %30 : vector<16x32xf32> to vector<16x32xbf16>
    %32 = vector.extract_strided_slice %8 {offsets = [0, 0], sizes = [32, 128], strides = [1, 1]} : vector<128x128xbf16> to vector<32x128xbf16>
    %cst_14 = arith.constant dense<0.000000e+00> : vector<16x128xf32>
    %33 = tpu.matmul %31, %32, %cst_14 {dimension_numbers = #tpu.dot_dimension_numbers<[1], [0], [0], [1], [0, 0, 1, 1], [], []>} : vector<16x32xbf16>, vector<32x128xbf16>, vector<16x128xf32> -> vector<16x128xf32>
    %34 = arith.addf %9, %33 : vector<16x128xf32>
    %35 = vector.extract_strided_slice %7 {offsets = [0, 32], sizes = [16, 32], strides = [1, 1]} : vector<16x384xf32> to vector<16x32xf32>
    %cst_15 = arith.constant 0.176776692 : f32
    %36 = vector.broadcast %cst_15 : f32 to vector<16x32xf32>
    %37 = arith.mulf %35, %36 : vector<16x32xf32>
    %38 = vector.shape_cast %37 : vector<16x32xf32> to vector<1x16x32xf32>
    %39 = vector.extract_strided_slice %7 {offsets = [0, 160], sizes = [16, 32], strides = [1, 1]} : vector<16x384xf32> to vector<16x32xf32>
    %40 = vector.shape_cast %39 : vector<16x32xf32> to vector<1x16x32xf32>
    %41 = vector.extract_strided_slice %7 {offsets = [0, 288], sizes = [16, 32], strides = [1, 1]} : vector<16x384xf32> to vector<16x32xf32>
    %42 = vector.shape_cast %41 : vector<16x32xf32> to vector<1x16x32xf32>
    "tpu.trace_start"() <{level = 10 : i32, message = "bqd,bkd->bqk"}> : () -> ()
    %cst_16 = arith.constant dense<0.000000e+00> : vector<1x16x16xf32>
    %43 = tpu.matmul %38, %40, %cst_16 {dimension_numbers = #tpu.dot_dimension_numbers<[2], [2], [1], [1], [0, 0, 0, 1, 1, 1], [0], [0]>} : vector<1x16x32xf32>, vector<1x16x32xf32>, vector<1x16x16xf32> -> vector<1x16x16xf32>
    "tpu.trace_stop"() : () -> ()
    %cst_17 = arith.constant dense<0xFF800000> : vector<1x16xf32>
    %44 = vector.multi_reduction <maximumf>, %43, %cst_17 [2] : vector<1x16x16xf32> to vector<1x16xf32>
    %45 = vector.shape_cast %44 : vector<1x16xf32> to vector<1x16x1xf32>
    %46 = vector.broadcast %45 : vector<1x16x1xf32> to vector<1x16x16xf32>
    %47 = arith.subf %43, %46 : vector<1x16x16xf32>
    %48 = math.exp %47 : vector<1x16x16xf32>
    %cst_18 = arith.constant dense<0.000000e+00> : vector<1x16xf32>
    %49 = vector.multi_reduction <add>, %48, %cst_18 [2] : vector<1x16x16xf32> to vector<1x16xf32>
    %50 = vector.shape_cast %49 : vector<1x16xf32> to vector<1x16x1xf32>
    %51 = tpu.reciprocal %50 {approx = true} : vector<1x16x1xf32> -> vector<1x16x1xf32>
    "tpu.trace_start"() <{level = 10 : i32, message = "bqk,bkd->bqd"}> : () -> ()
    %cst_19 = arith.constant dense<0.000000e+00> : vector<1x16x32xf32>
    %52 = tpu.matmul %48, %42, %cst_19 {dimension_numbers = #tpu.dot_dimension_numbers<[2], [1], [1], [2], [0, 0, 0, 1, 1, 2], [0], [0]>} : vector<1x16x16xf32>, vector<1x16x32xf32>, vector<1x16x32xf32> -> vector<1x16x32xf32>
    "tpu.trace_stop"() : () -> ()
    %53 = vector.broadcast %51 : vector<1x16x1xf32> to vector<1x16x32xf32>
    %54 = arith.mulf %52, %53 : vector<1x16x32xf32>
    %55 = vector.shape_cast %54 : vector<1x16x32xf32> to vector<16x32xf32>
    %56 = arith.truncf %55 : vector<16x32xf32> to vector<16x32xbf16>
    %57 = vector.extract_strided_slice %8 {offsets = [32, 0], sizes = [32, 128], strides = [1, 1]} : vector<128x128xbf16> to vector<32x128xbf16>
    %cst_20 = arith.constant dense<0.000000e+00> : vector<16x128xf32>
    %58 = tpu.matmul %56, %57, %cst_20 {dimension_numbers = #tpu.dot_dimension_numbers<[1], [0], [0], [1], [0, 0, 1, 1], [], []>} : vector<16x32xbf16>, vector<32x128xbf16>, vector<16x128xf32> -> vector<16x128xf32>
    %59 = arith.addf %34, %58 : vector<16x128xf32>
    %60 = vector.extract_strided_slice %7 {offsets = [0, 64], sizes = [16, 32], strides = [1, 1]} : vector<16x384xf32> to vector<16x32xf32>
    %cst_21 = arith.constant 0.176776692 : f32
    %61 = vector.broadcast %cst_21 : f32 to vector<16x32xf32>
    %62 = arith.mulf %60, %61 : vector<16x32xf32>
    %63 = vector.shape_cast %62 : vector<16x32xf32> to vector<1x16x32xf32>
    %64 = vector.extract_strided_slice %7 {offsets = [0, 192], sizes = [16, 32], strides = [1, 1]} : vector<16x384xf32> to vector<16x32xf32>
    %65 = vector.shape_cast %64 : vector<16x32xf32> to vector<1x16x32xf32>
    %66 = vector.extract_strided_slice %7 {offsets = [0, 320], sizes = [16, 32], strides = [1, 1]} : vector<16x384xf32> to vector<16x32xf32>
    %67 = vector.shape_cast %66 : vector<16x32xf32> to vector<1x16x32xf32>
    "tpu.trace_start"() <{level = 10 : i32, message = "bqd,bkd->bqk"}> : () -> ()
    %cst_22 = arith.constant dense<0.000000e+00> : vector<1x16x16xf32>
    %68 = tpu.matmul %63, %65, %cst_22 {dimension_numbers = #tpu.dot_dimension_numbers<[2], [2], [1], [1], [0, 0, 0, 1, 1, 1], [0], [0]>} : vector<1x16x32xf32>, vector<1x16x32xf32>, vector<1x16x16xf32> -> vector<1x16x16xf32>
    "tpu.trace_stop"() : () -> ()
    %cst_23 = arith.constant dense<0xFF800000> : vector<1x16xf32>
    %69 = vector.multi_reduction <maximumf>, %68, %cst_23 [2] : vector<1x16x16xf32> to vector<1x16xf32>
    %70 = vector.shape_cast %69 : vector<1x16xf32> to vector<1x16x1xf32>
    %71 = vector.broadcast %70 : vector<1x16x1xf32> to vector<1x16x16xf32>
    %72 = arith.subf %68, %71 : vector<1x16x16xf32>
    %73 = math.exp %72 : vector<1x16x16xf32>
    %cst_24 = arith.constant dense<0.000000e+00> : vector<1x16xf32>
    %74 = vector.multi_reduction <add>, %73, %cst_24 [2] : vector<1x16x16xf32> to vector<1x16xf32>
    %75 = vector.shape_cast %74 : vector<1x16xf32> to vector<1x16x1xf32>
    %76 = tpu.reciprocal %75 {approx = true} : vector<1x16x1xf32> -> vector<1x16x1xf32>
    "tpu.trace_start"() <{level = 10 : i32, message = "bqk,bkd->bqd"}> : () -> ()
    %cst_25 = arith.constant dense<0.000000e+00> : vector<1x16x32xf32>
    %77 = tpu.matmul %73, %67, %cst_25 {dimension_numbers = #tpu.dot_dimension_numbers<[2], [1], [1], [2], [0, 0, 0, 1, 1, 2], [0], [0]>} : vector<1x16x16xf32>, vector<1x16x32xf32>, vector<1x16x32xf32> -> vector<1x16x32xf32>
    "tpu.trace_stop"() : () -> ()
    %78 = vector.broadcast %76 : vector<1x16x1xf32> to vector<1x16x32xf32>
    %79 = arith.mulf %77, %78 : vector<1x16x32xf32>
    %80 = vector.shape_cast %79 : vector<1x16x32xf32> to vector<16x32xf32>
    %81 = arith.truncf %80 : vector<16x32xf32> to vector<16x32xbf16>
    %82 = vector.extract_strided_slice %8 {offsets = [64, 0], sizes = [32, 128], strides = [1, 1]} : vector<128x128xbf16> to vector<32x128xbf16>
    %cst_26 = arith.constant dense<0.000000e+00> : vector<16x128xf32>
    %83 = tpu.matmul %81, %82, %cst_26 {dimension_numbers = #tpu.dot_dimension_numbers<[1], [0], [0], [1], [0, 0, 1, 1], [], []>} : vector<16x32xbf16>, vector<32x128xbf16>, vector<16x128xf32> -> vector<16x128xf32>
    %84 = arith.addf %59, %83 : vector<16x128xf32>
    %85 = vector.extract_strided_slice %7 {offsets = [0, 96], sizes = [16, 32], strides = [1, 1]} : vector<16x384xf32> to vector<16x32xf32>
    %cst_27 = arith.constant 0.176776692 : f32
    %86 = vector.broadcast %cst_27 : f32 to vector<16x32xf32>
    %87 = arith.mulf %85, %86 : vector<16x32xf32>
    %88 = vector.shape_cast %87 : vector<16x32xf32> to vector<1x16x32xf32>
    %89 = vector.extract_strided_slice %7 {offsets = [0, 224], sizes = [16, 32], strides = [1, 1]} : vector<16x384xf32> to vector<16x32xf32>
    %90 = vector.shape_cast %89 : vector<16x32xf32> to vector<1x16x32xf32>
    %91 = vector.extract_strided_slice %7 {offsets = [0, 352], sizes = [16, 32], strides = [1, 1]} : vector<16x384xf32> to vector<16x32xf32>
    %92 = vector.shape_cast %91 : vector<16x32xf32> to vector<1x16x32xf32>
    "tpu.trace_start"() <{level = 10 : i32, message = "bqd,bkd->bqk"}> : () -> ()
    %cst_28 = arith.constant dense<0.000000e+00> : vector<1x16x16xf32>
    %93 = tpu.matmul %88, %90, %cst_28 {dimension_numbers = #tpu.dot_dimension_numbers<[2], [2], [1], [1], [0, 0, 0, 1, 1, 1], [0], [0]>} : vector<1x16x32xf32>, vector<1x16x32xf32>, vector<1x16x16xf32> -> vector<1x16x16xf32>
    "tpu.trace_stop"() : () -> ()
    %cst_29 = arith.constant dense<0xFF800000> : vector<1x16xf32>
    %94 = vector.multi_reduction <maximumf>, %93, %cst_29 [2] : vector<1x16x16xf32> to vector<1x16xf32>
    %95 = vector.shape_cast %94 : vector<1x16xf32> to vector<1x16x1xf32>
    %96 = vector.broadcast %95 : vector<1x16x1xf32> to vector<1x16x16xf32>
    %97 = arith.subf %93, %96 : vector<1x16x16xf32>
    %98 = math.exp %97 : vector<1x16x16xf32>
    %cst_30 = arith.constant dense<0.000000e+00> : vector<1x16xf32>
    %99 = vector.multi_reduction <add>, %98, %cst_30 [2] : vector<1x16x16xf32> to vector<1x16xf32>
    %100 = vector.shape_cast %99 : vector<1x16xf32> to vector<1x16x1xf32>
    %101 = tpu.reciprocal %100 {approx = true} : vector<1x16x1xf32> -> vector<1x16x1xf32>
    "tpu.trace_start"() <{level = 10 : i32, message = "bqk,bkd->bqd"}> : () -> ()
    %cst_31 = arith.constant dense<0.000000e+00> : vector<1x16x32xf32>
    %102 = tpu.matmul %98, %92, %cst_31 {dimension_numbers = #tpu.dot_dimension_numbers<[2], [1], [1], [2], [0, 0, 0, 1, 1, 2], [0], [0]>} : vector<1x16x16xf32>, vector<1x16x32xf32>, vector<1x16x32xf32> -> vector<1x16x32xf32>
    "tpu.trace_stop"() : () -> ()
    %103 = vector.broadcast %101 : vector<1x16x1xf32> to vector<1x16x32xf32>
    %104 = arith.mulf %102, %103 : vector<1x16x32xf32>
    %105 = vector.shape_cast %104 : vector<1x16x32xf32> to vector<16x32xf32>
    %106 = arith.truncf %105 : vector<16x32xf32> to vector<16x32xbf16>
    %107 = vector.extract_strided_slice %8 {offsets = [96, 0], sizes = [32, 128], strides = [1, 1]} : vector<128x128xbf16> to vector<32x128xbf16>
    %cst_32 = arith.constant dense<0.000000e+00> : vector<16x128xf32>
    %108 = tpu.matmul %106, %107, %cst_32 {dimension_numbers = #tpu.dot_dimension_numbers<[1], [0], [0], [1], [0, 0, 1, 1], [], []>} : vector<16x32xbf16>, vector<32x128xbf16>, vector<16x128xf32> -> vector<16x128xf32>
    %109 = arith.addf %84, %108 : vector<16x128xf32>
    %c0_33 = arith.constant 0 : index
    %c0_34 = arith.constant 0 : index
    %110 = vector.load %arg5[%c0_33, %c0_34] : memref<1x128xf32, #tpu.memory_space<vmem>>, vector<1x128xf32>
    %111 = vector.broadcast %110 : vector<1x128xf32> to vector<16x128xf32>
    %112 = arith.addf %109, %111 : vector<16x128xf32>
    %113 = vector.shape_cast %112 : vector<16x128xf32> to vector<1x16x128xf32>
    %c0_35 = arith.constant 0 : index
    %c0_36 = arith.constant 0 : index
    %c0_37 = arith.constant 0 : index
    %114 = vector.load %arg6[%c0_35, %c0_36, %c0_37] : memref<1x16x128xf32, #tpu.memory_space<vmem>>, vector<1x16x128xf32>
    tpu.vector_store %arg6[%c0_35, %c0_36, %c0_37], %113 {strides = array<i32>} : memref<1x16x128xf32, #tpu.memory_space<vmem>>, vector<1x16x128xf32>,
    return
  }
  func.func @transform_0(%arg0: i32) -> (i32, i32, i32) {
    %c0_i32 = arith.constant 0 : i32
    %c0_i32_0 = arith.constant 0 : i32
    %c0_i32_1 = arith.constant 0 : i32
    return %arg0, %c0_i32, %c0_i32_0 : i32, i32, i32
  }
  func.func @transform_1(%arg0: i32) -> (i32, i32) {
    %c0_i32 = arith.constant 0 : i32
    %c0_i32_0 = arith.constant 0 : i32
    %c0_i32_1 = arith.constant 0 : i32
    return %c0_i32, %c0_i32_0 : i32, i32
  }
  func.func @transform_2(%arg0: i32) -> (i32, i32) {
    %c0_i32 = arith.constant 0 : i32
    %c0_i32_0 = arith.constant 0 : i32
    %c0_i32_1 = arith.constant 0 : i32
    return %c0_i32, %c0_i32_0 : i32, i32
  }
  func.func @transform_3(%arg0: i32) -> (i32, i32) {
    %c0_i32 = arith.constant 0 : i32
    %c0_i32_0 = arith.constant 0 : i32
    %c0_i32_1 = arith.constant 0 : i32
    return %c0_i32, %c0_i32_0 : i32, i32
  }
  func.func @transform_4(%arg0: i32) -> (i32, i32) {
    %c0_i32 = arith.constant 0 : i32
    %c0_i32_0 = arith.constant 0 : i32
    %c0_i32_1 = arith.constant 0 : i32
    return %c0_i32, %c0_i32_0 : i32, i32
  }
  func.func @transform_5(%arg0: i32) -> (i32, i32, i32) {
    %c0_i32 = arith.constant 0 : i32
    %c0_i32_0 = arith.constant 0 : i32
    %c0_i32_1 = arith.constant 0 : i32
    return %arg0, %c0_i32, %c0_i32_0 : i32, i32, i32
  }
}

</mosaic_0001>

<llo_original>
// kernel: multi_head_attention.1
$region0: #{multi_head_attention.1}
  #allocation0 [shape = 'u32[]', space=smem, size = 0x4, offset = 0x4, fixed_abs, tag = 'smem constant byte address 0x4 - core index']
  #allocation1 [shape = 'u32[144,128]{1,0:T(1,128)}', space=vmem, size = 0x12000, scoped, tag = 'internal scratch']
  %s0 = inlined_call_operand.vmem [shape: f32[2,16,128], index: 0, kind: input, shape index: {}]
  %s1 = inlined_call_operand.vmem [shape: bf16[128,384], index: 1, kind: input, shape index: {}]
  %s2 = inlined_call_operand.vmem [shape: f32[1,384], index: 2, kind: input, shape index: {}]
  %s3 = inlined_call_operand.vmem [shape: bf16[128,128], index: 3, kind: input, shape index: {}]
  %s4 = inlined_call_operand.vmem [shape: f32[1,128], index: 4, kind: input, shape index: {}]
  %s5 = inlined_call_operand.hbm [shape: f32[2,16,128], index: 5, kind: output, shape index: {}]
  %s6 = sld [smem:[#allocation0]]
  $region53: #{multi_head_attention.1} parent=0
    _
  %s8 = ssub.s32 1, %s6
  %s9 = scalar_select 0, %s8, %s6
  $region1: #{multi_head_attention.1} parent=0
    #allocation2 [shape = 'u8[16384]{0}', space=vmem, size = 0x4000, scoped, tag = 'output window, operand 0']
    #allocation3 [shape = 's32[2]{0}', space=sflag, size = 0x8, scoped, tag = 'scoped memory for multi_head_attention.1']
    %10 = vsyncpa [#allocation3], 0
    %s11 = scalar_lea.sflag [#allocation3], 1
    %12 = vsyncpa %s11, 0
    loop: start=0, step=1, limit=4
    $region2: #{multi_head_attention.1} parent=1 // loop_pre_header
      _
    $region3: #{multi_head_attention.1} parent=1 // loop_header
      %s14 = sphi 0, %s18
      %p15 = scmp.ge.s32.totalorder %s14, 4
      %s24 = sphi 0, %s26
      %s27 = sphi 0, %s24
      %s28 = sphi 0, %s27
      %s44 = sphi 0, %s28
      %s48 = sphi 0, %s48
      %s50 = sphi 0, %s48
      %s51 = sphi 0, %s50
      %s65 = sphi 0, %s51
      %s69 = sphi 0, %s69
      %s71 = sphi 0, %s69
      %s72 = sphi 0, %s71
      %s86 = sphi 0, %s72
      %s90 = sphi 0, %s90
      %s92 = sphi 0, %s90
      %s93 = sphi 0, %s92
      %s107 = sphi 0, %s93
      %s111 = sphi 0, %s111
      %s113 = sphi 0, %s111
      %s114 = sphi 0, %s113
      %s128 = sphi 0, %s114
      %s134 = sphi 0, %s136
      %s137 = sphi 0, %s134
      %s138 = sphi 0, %s137
      %s154 = sphi 0, %s138
    $region4: #{multi_head_attention.1} parent=1 // loop_header_branch
      %17 = sbr.rel (%p15) target = $region8
    $region5: #{multi_head_attention.1} parent=1 // loop_body
      %s19 = ssub.s32 %s14, 1
      %s20 = ssub.s32 %s14, 2
      %s21 = sadd.s32 %s14, 1
      %s22 = ssub.s32 %s14, %s21
      %p23 = scmp.eq.s32.totalorder %s22, 0
      %s25 = sadd.s32 %s24, 1
      %s26 = scalar_select %p23, %s24, %s25
      %p29 = pneg %p23
      %p30 = scmp.eq.s32.totalorder %s14, 1
      %p31 = por %p29, %p30
      %p32 = scmp.ne.s32.totalorder %s24, %s27
      %p33 = scmp.eq.s32.totalorder %s14, 0
      %p34 = por %p32, %p33
      %p35 = scmp.ne.s32.totalorder %s24, %s27
      %p36 = scmp.eq.s32.totalorder %s19, 1
      %p37 = por %p35, %p36
      %p38 = scmp.ne.s32.totalorder %s27, %s28
      %p39 = scmp.eq.s32.totalorder %s19, 0
      %p40 = por %p38, %p39
      %p41 = scmp.ne.s32.totalorder %s27, %s28
      %p42 = scmp.eq.s32.totalorder %s20, 1
      %p43 = por %p41, %p42
      %p45 = scmp.ne.s32.totalorder %s28, %s44
      %p46 = scmp.eq.s32.totalorder %s20, 0
      %p47 = por %p45, %p46
      %s49 = sadd.s32 %s48, 1
      %p52 = scmp.eq.s32.totalorder %s14, 1
      %p53 = scmp.ne.s32.totalorder %s48, %s50
      %p54 = scmp.eq.s32.totalorder %s14, 0
      %p55 = por %p53, %p54
      %p56 = scmp.ne.s32.totalorder %s48, %s50
      %p57 = scmp.eq.s32.totalorder %s19, 1
      %p58 = por %p56, %p57
      %p59 = scmp.ne.s32.totalorder %s50, %s51
      %p60 = scmp.eq.s32.totalorder %s19, 0
      %p61 = por %p59, %p60
      %p62 = scmp.ne.s32.totalorder %s50, %s51
      %p63 = scmp.eq.s32.totalorder %s20, 1
      %p64 = por %p62, %p63
      %p66 = scmp.ne.s32.totalorder %s51, %s65
      %p67 = scmp.eq.s32.totalorder %s20, 0
      %p68 = por %p66, %p67
      %s70 = sadd.s32 %s69, 1
      %p73 = scmp.eq.s32.totalorder %s14, 1
      %p74 = scmp.ne.s32.totalorder %s69, %s71
      %p75 = scmp.eq.s32.totalorder %s14, 0
      %p76 = por %p74, %p75
      %p77 = scmp.ne.s32.totalorder %s69, %s71
      %p78 = scmp.eq.s32.totalorder %s19, 1
      %p79 = por %p77, %p78
      %p80 = scmp.ne.s32.totalorder %s71, %s72
      %p81 = scmp.eq.s32.totalorder %s19, 0
      %p82 = por %p80, %p81
      %p83 = scmp.ne.s32.totalorder %s71, %s72
      %p84 = scmp.eq.s32.totalorder %s20, 1
      %p85 = por %p83, %p84
      %p87 = scmp.ne.s32.totalorder %s72, %s86
      %p88 = scmp.eq.s32.totalorder %s20, 0
      %p89 = por %p87, %p88
      %s91 = sadd.s32 %s90, 1
      %p94 = scmp.eq.s32.totalorder %s14, 1
      %p95 = scmp.ne.s32.totalorder %s90, %s92
      %p96 = scmp.eq.s32.totalorder %s14, 0
      %p97 = por %p95, %p96
      %p98 = scmp.ne.s32.totalorder %s90, %s92
      %p99 = scmp.eq.s32.totalorder %s19, 1
      %p100 = por %p98, %p99
      %p101 = scmp.ne.s32.totalorder %s92, %s93
      %p102 = scmp.eq.s32.totalorder %s19, 0
      %p103 = por %p101, %p102
      %p104 = scmp.ne.s32.totalorder %s92, %s93
      %p105 = scmp.eq.s32.totalorder %s20, 1
      %p106 = por %p104, %p105
      %p108 = scmp.ne.s32.totalorder %s93, %s107
      %p109 = scmp.eq.s32.totalorder %s20, 0
      %p110 = por %p108, %p109
      %s112 = sadd.s32 %s111, 1
      %p115 = scmp.eq.s32.totalorder %s14, 1
      %p116 = scmp.ne.s32.totalorder %s111, %s113
      %p117 = scmp.eq.s32.totalorder %s14, 0
      %p118 = por %p116, %p117
      %p119 = scmp.ne.s32.totalorder %s111, %s113
      %p120 = scmp.eq.s32.totalorder %s19, 1
      %p121 = por %p119, %p120
      %p122 = scmp.ne.s32.totalorder %s113, %s114
      %p123 = scmp.eq.s32.totalorder %s19, 0
      %p124 = por %p122, %p123
      %p125 = scmp.ne.s32.totalorder %s113, %s114
      %p126 = scmp.eq.s32.totalorder %s20, 1
      %p127 = por %p125, %p126
      %p129 = scmp.ne.s32.totalorder %s114, %s128
      %p130 = scmp.eq.s32.totalorder %s20, 0
      %p131 = por %p129, %p130
      %s132 = ssub.s32 %s14, %s21
      %p133 = scmp.eq.s32.totalorder %s132, 0
      %s135 = sadd.s32 %s134, 1
      %s136 = scalar_select %p133, %s134, %s135
      %p139 = pneg %p133
      %p140 = scmp.eq.s32.totalorder %s14, 1
      %p141 = por %p139, %p140
      %p142 = scmp.ne.s32.totalorder %s134, %s137
      %p143 = scmp.eq.s32.totalorder %s14, 0
      %p144 = por %p142, %p143
      %p145 = scmp.ne.s32.totalorder %s134, %s137
      %p146 = scmp.eq.s32.totalorder %s19, 1
      %p147 = por %p145, %p146
      %p148 = scmp.ne.s32.totalorder %s137, %s138
      %p149 = scmp.eq.s32.totalorder %s19, 0
      %p150 = por %p148, %p149
      %p151 = scmp.ne.s32.totalorder %s137, %s138
      %p152 = scmp.eq.s32.totalorder %s20, 1
      %p153 = por %p151, %p152
      %p155 = scmp.ne.s32.totalorder %s138, %s154
      %p156 = scmp.eq.s32.totalorder %s20, 0
      %p157 = por %p155, %p156
      %p158 = scmp.le.s32.totalorder 1, %s14
      %p159 = scmp.lt.s32.totalorder %s14, 3
      %p160 = pnand %p158, %p159
      %p161 = pneg %p160
      // Predicated region
      $region9: #{multi_head_attention.1} parent=5 // pred_check
        _
      $region10: #{multi_head_attention.1} parent=5 // pred_check_branch
        %163 = sbr.rel (%p160) target = $region12
      $region11: #{multi_head_attention.1} parent=5 // pred_region
        %s164 = ssub.s32 %s14, 1
        // Predicated region
        $region13: #{multi_head_attention.1} parent=11 // pred_check
          %p165 = pneg %p61
        $region14: #{multi_head_attention.1} parent=11 // pred_check_branch
          %167 = sbr.rel (%p165) target = $region16
        $region15: #{multi_head_attention.1} parent=11 // pred_region
          _
        $region16: #{multi_head_attention.1} parent=11 // pred_fallthru
          _
        // Predicated region
        $region17: #{multi_head_attention.1} parent=11 // pred_check
          %p168 = pneg %p82
        $region18: #{multi_head_attention.1} parent=11 // pred_check_branch
          %170 = sbr.rel (%p168) target = $region20
        $region19: #{multi_head_attention.1} parent=11 // pred_region
          _
        $region20: #{multi_head_attention.1} parent=11 // pred_fallthru
          _
        // Predicated region
        $region21: #{multi_head_attention.1} parent=11 // pred_check
          %p171 = pneg %p103
        $region22: #{multi_head_attention.1} parent=11 // pred_check_branch
          %173 = sbr.rel (%p171) target = $region24
        $region23: #{multi_head_attention.1} parent=11 // pred_region
          _
        $region24: #{multi_head_attention.1} parent=11 // pred_fallthru
          _
        // Predicated region
        $region25: #{multi_head_attention.1} parent=11 // pred_check
          %p174 = pneg %p124
        $region26: #{multi_head_attention.1} parent=11 // pred_check_branch
          %176 = sbr.rel (%p174) target = $region28
        $region27: #{multi_head_attention.1} parent=11 // pred_region
          _
        $region28: #{multi_head_attention.1} parent=11 // pred_fallthru
          _
      $region12: #{multi_head_attention.1} parent=5 // pred_fallthru
        _
      %p177 = scmp.lt.s32.totalorder %s14, 2
      // Predicated region
      $region29: #{multi_head_attention.1} parent=5 // pred_check
        %p178 = pneg %p177
      $region30: #{multi_head_attention.1} parent=5 // pred_check_branch
        %180 = sbr.rel (%p178) target = $region32
      $region31: #{multi_head_attention.1} parent=5 // pred_region
        // Predicated region
        $region33: #{multi_head_attention.1} parent=31 // pred_check
          %p181 = pneg %p34
        $region34: #{multi_head_attention.1} parent=31 // pred_check_branch
          %183 = sbr.rel (%p181) target = $region36
        $region35: #{multi_head_attention.1} parent=31 // pred_region
          %p184 = scmp.lt.s32.totalorder %s14, 1
          %s185 = scalar_select %p184, %s14, 1
          %s186 = smul.addr %s185, 2
          %s187 = smul.addr %s186, 8
          %s188 = scalar_lea.vmem %s0, %s187
        $region36: #{multi_head_attention.1} parent=31 // pred_fallthru
          _
      $region32: #{multi_head_attention.1} parent=5 // pred_fallthru
        _
      %p189 = scmp.le.s32.totalorder 1, %s14
      %p190 = scmp.lt.s32.totalorder %s14, 3
      %p191 = pnand %p189, %p190
      %p192 = pneg %p191
      // Predicated region
      $region37: #{multi_head_attention.1} parent=5 // pred_check
        _
      $region38: #{multi_head_attention.1} parent=5 // pred_check_branch
        %194 = sbr.rel (%p191) target = $region40
      $region39: #{multi_head_attention.1} parent=5 // pred_region
        %s195 = ssub.s32 %s14, 1
        %p196 = scmp.lt.s32.totalorder %s19, 1
        %s197 = scalar_select %p196, %s19, 1
        %s198 = smul.addr %s197, 2
        %s199 = smul.addr %s198, 8
        %s200 = scalar_lea.vmem %s0, %s199
        %p201 = pneg %p40
        %p202 = pneg %p37
        %p203 = pneg %p61
        %p204 = pneg %p58
        %p205 = pneg %p82
        %p206 = pneg %p79
        %p207 = pneg %p103
        %p208 = pneg %p100
        %p209 = pneg %p124
        %p210 = pneg %p121
        %p211 = pneg %p150
        %p212 = pneg %p147
        %s213 = sand.u32 %s137, 1
        %s214 = scalar_lea.sflag [#allocation3], %s213
        %s215 = sand.u32 %s137, 1
        %s216 = smul.addr %s215, 16
        %s217 = scalar_lea.vmem [#allocation2], %s216
        %p218 = scmp.lt.s32.totalorder %s19, 1
        %s219 = scalar_select %p218, %s19, 1
        %s220 = smul.addr %s219, 2
        %s221 = smul.addr %s220, 8
        %s222 = scalar_lea.vmem %s0, %s221
        %v224 = vld [vmem:[%s222] sm:$0xff]
        %v225 = vld [vmem:[%s222 + $0x8] sm:$0xff]
        %v226 = vpack.c.bf16 %v225, %v224
        %v227 = vld [vmem:[%s1] sm:$0xff]
        %v228 = vld [vmem:[%s1 + $0x8] sm:$0xf]
        %v229 = vld [vmem:[%s1 + $0xc] sm:$0xff]
        %v230 = vld [vmem:[%s1 + $0x14] sm:$0xf]
        %v231 = vld [vmem:[%s1 + $0x18] sm:$0xff]
        %v232 = vld [vmem:[%s1 + $0x20] sm:$0xf]
        %v233 = vld [vmem:[%s1 + $0x24] sm:$0xff]
        %v234 = vld [vmem:[%s1 + $0x2c] sm:$0xf]
        %v235 = vld [vmem:[%s1 + $0x30] sm:$0xff]
        %v236 = vld [vmem:[%s1 + $0x38] sm:$0xf]
        %v237 = vld [vmem:[%s1 + $0x3c] sm:$0xff]
        %v238 = vld [vmem:[%s1 + $0x44] sm:$0xf]
        %v239 = vld [vmem:[%s1 + $0x48] sm:$0xff]
        %v240 = vld [vmem:[%s1 + $0x50] sm:$0xf]
        %v241 = vld [vmem:[%s1 + $0x54] sm:$0xff]
        %v242 = vld [vmem:[%s1 + $0x5c] sm:$0xf]
        %v243 = vld [vmem:[%s1 + $0x60] sm:$0xff]
        %v244 = vld [vmem:[%s1 + $0x68] sm:$0xf]
        %v245 = vld [vmem:[%s1 + $0x6c] sm:$0xff]
        %v246 = vld [vmem:[%s1 + $0x74] sm:$0xf]
        %v247 = vld [vmem:[%s1 + $0x78] sm:$0xff]
        %v248 = vld [vmem:[%s1 + $0x80] sm:$0xf]
        %v249 = vld [vmem:[%s1 + $0x84] sm:$0xff]
        %v250 = vld [vmem:[%s1 + $0x8c] sm:$0xf]
        %v251 = vld [vmem:[%s1 + $0x90] sm:$0xff]
        %v252 = vld [vmem:[%s1 + $0x98] sm:$0xf]
        %v253 = vld [vmem:[%s1 + $0x9c] sm:$0xff]
        %v254 = vld [vmem:[%s1 + $0xa4] sm:$0xf]
        %v255 = vld [vmem:[%s1 + $0xa8] sm:$0xff]
        %v256 = vld [vmem:[%s1 + $0xb0] sm:$0xf]
        %v257 = vld [vmem:[%s1 + $0xb4] sm:$0xff]
        %v258 = vld [vmem:[%s1 + $0xbc] sm:$0xf]
        %v259 = vld [vmem:[%s2] sm:$0x7]
        %v261 = vlaneseq
        %v262 = vshrl.u32 %v261, 7
        %v263 = vsub.s32 0, %v262
        %v264 = vrot.slane %v259, %v263
        %v265 = vlaneseq
        %v266 = vshrl.u32 %v265, 7
        %v267 = vsub.s32 1, %v266
        %v268 = vrot.slane %v259, %v267
        %v269 = vlaneseq
        %v270 = vshrl.u32 %v269, 7
        %v271 = vsub.s32 2, %v270
        %v272 = vrot.slane %v259, %v271
        %v308 = vunpack.c.l.b16 %v227
        %v309 = vunpack.c.h.b16 %v227
        %v310 = vunpack.c.l.b16 %v228
        %v311 = vunpack.c.l.b16 %v229
        %v312 = vunpack.c.h.b16 %v229
        %v313 = vunpack.c.l.b16 %v230
        %v314 = vunpack.c.l.b16 %v231
        %v315 = vunpack.c.h.b16 %v231
        %v316 = vunpack.c.l.b16 %v232
        %v317 = vunpack.c.l.b16 %v233
        %v318 = vunpack.c.h.b16 %v233
        %v319 = vunpack.c.l.b16 %v234
        %v320 = vunpack.c.l.b16 %v235
        %v321 = vunpack.c.h.b16 %v235
        %v322 = vunpack.c.l.b16 %v236
        %v323 = vunpack.c.l.b16 %v237
        %v324 = vunpack.c.h.b16 %v237
        %v325 = vunpack.c.l.b16 %v238
        %v326 = vunpack.c.l.b16 %v239
        %v327 = vunpack.c.h.b16 %v239
        %v328 = vunpack.c.l.b16 %v240
        %v329 = vunpack.c.l.b16 %v241
        %v330 = vunpack.c.h.b16 %v241
        %v331 = vunpack.c.l.b16 %v242
        %v332 = vunpack.c.l.b16 %v243
        %v333 = vunpack.c.h.b16 %v243
        %v334 = vunpack.c.l.b16 %v244
        %v335 = vunpack.c.l.b16 %v245
        %v336 = vunpack.c.h.b16 %v245
        %v337 = vunpack.c.l.b16 %v246
        %v338 = vunpack.c.l.b16 %v247
        %v339 = vunpack.c.h.b16 %v247
        %v340 = vunpack.c.l.b16 %v248
        %v341 = vunpack.c.l.b16 %v249
        %v342 = vunpack.c.h.b16 %v249
        %v343 = vunpack.c.l.b16 %v250
        %v344 = vunpack.c.l.b16 %v251
        %v345 = vunpack.c.h.b16 %v251
        %v346 = vunpack.c.l.b16 %v252
        %v347 = vunpack.c.l.b16 %v253
        %v348 = vunpack.c.h.b16 %v253
        %v349 = vunpack.c.l.b16 %v254
        %v350 = vunpack.c.l.b16 %v255
        %v351 = vunpack.c.h.b16 %v255
        %v352 = vunpack.c.l.b16 %v256
        %v353 = vunpack.c.l.b16 %v257
        %v354 = vunpack.c.h.b16 %v257
        %v355 = vunpack.c.l.b16 %v258
        %v356 = vpack.c.b16 %v311, %v308
        %v357 = vpack.c.b16 %v312, %v309
        %v358 = vpack.c.b16 %v313, %v310
        %v359 = vpack.c.b16 %v317, %v314
        %v360 = vpack.c.b16 %v318, %v315
        %v361 = vpack.c.b16 %v319, %v316
        %v362 = vpack.c.b16 %v323, %v320
        %v363 = vpack.c.b16 %v324, %v321
        %v364 = vpack.c.b16 %v325, %v322
        %v365 = vpack.c.b16 %v329, %v326
        %v366 = vpack.c.b16 %v330, %v327
        %v367 = vpack.c.b16 %v331, %v328
        %v368 = vpack.c.b16 %v335, %v332
        %v369 = vpack.c.b16 %v336, %v333
        %v370 = vpack.c.b16 %v337, %v334
        %v371 = vpack.c.b16 %v341, %v338
        %v372 = vpack.c.b16 %v342, %v339
        %v373 = vpack.c.b16 %v343, %v340
        %v374 = vpack.c.b16 %v347, %v344
        %v375 = vpack.c.b16 %v348, %v345
        %v376 = vpack.c.b16 %v349, %v346
        %v377 = vpack.c.b16 %v353, %v350
        %v378 = vpack.c.b16 %v354, %v351
        %v379 = vpack.c.b16 %v355, %v352
        %404 = vmatprep.subr.bf16.mxu0 %v357
        %405 = vmatpush1.bf16.msra.mxu0 %v356
        %406 = vmatprep.subr.bf16.mxu0 %v360
        %407 = vmatpush1.bf16.msra.mxu0 %v359
        %408 = vmatprep.subr.bf16.mxu0 %v363
        %409 = vmatpush1.bf16.msra.mxu0 %v362
        %410 = vmatprep.subr.bf16.mxu0 %v366
        %411 = vmatpush1.bf16.msra.mxu0 %v365
        %412 = vmatprep.subr.bf16.mxu0 %v369
        %413 = vmatpush1.bf16.msra.mxu0 %v368
        %414 = vmatprep.subr.bf16.mxu0 %v372
        %415 = vmatpush1.bf16.msra.mxu0 %v371
        %416 = vmatprep.subr.bf16.mxu0 %v375
        %417 = vmatpush1.bf16.msra.mxu0 %v374
        %418 = vmatprep.subr.bf16.mxu0 %v378
        %419 = vmatpush1.bf16.msra.mxu0 %v377
        %420 = vmatprep.subr.bf16.mxu0 0
        %421 = vmatpush1.bf16.msra.mxu0 0
        %422 = vmatprep.subr.bf16.mxu0 0
        %423 = vmatpush1.bf16.msra.mxu0 0
        %424 = vmatprep.subr.bf16.mxu0 0
        %425 = vmatpush1.bf16.msra.mxu0 0
        %426 = vmatprep.subr.bf16.mxu0 0
        %427 = vmatpush1.bf16.msra.mxu0 0
        %428 = vmatprep.subr.bf16.mxu0 0
        %429 = vmatpush1.bf16.msra.mxu0 0
        %430 = vmatprep.subr.bf16.mxu0 0
        %431 = vmatpush1.bf16.msra.mxu0 0
        %432 = vmatprep.subr.bf16.mxu0 0
        %433 = vmatpush1.bf16.msra.mxu0 0
        %434 = vmatprep.subr.bf16.mxu0 0
        %435 = vmatpush1.bf16.msra.mxu0 0
        %436 = vmatprep.mubr.bf16.mxu0 0
        %437 = vmatmul.mubr.bf16.gmra.mrb[0].mxu0 %v226
        %v438 = vpop.f32.mrb[0].mxu0
        %v439 = vadd.f32 %v264, %v438
        %v440 = vpop.f32.mrb[0].mxu0
        %v441 = vadd.f32 %v268, %v440
        %v442 = vpop.f32.mrb[0].mxu0
        %v443 = vadd.f32 %v264, %v442
        %v444 = vpop.f32.mrb[0].mxu0
        %v445 = vadd.f32 %v268, %v444
        %446 = vdwg.mxu0
        %447 = vmatprep.subr.bf16.mxu0 0
        %448 = vmatpush1.bf16.msra.mxu0 %v358
        %449 = vmatprep.subr.bf16.mxu0 0
        %450 = vmatpush1.bf16.msra.mxu0 %v361
        %451 = vmatprep.subr.bf16.mxu0 0
        %452 = vmatpush1.bf16.msra.mxu0 %v364
        %453 = vmatprep.subr.bf16.mxu0 0
        %454 = vmatpush1.bf16.msra.mxu0 %v367
        %455 = vmatprep.subr.bf16.mxu0 0
        %456 = vmatpush1.bf16.msra.mxu0 %v370
        %457 = vmatprep.subr.bf16.mxu0 0
        %458 = vmatpush1.bf16.msra.mxu0 %v373
        %459 = vmatprep.subr.bf16.mxu0 0
        %460 = vmatpush1.bf16.msra.mxu0 %v376
        %461 = vmatprep.subr.bf16.mxu0 0
        %462 = vmatpush1.bf16.msra.mxu0 %v379
        %463 = vmatprep.subr.bf16.mxu0 0
        %464 = vmatpush1.bf16.msra.mxu0 0
        %465 = vmatprep.subr.bf16.mxu0 0
        %466 = vmatpush1.bf16.msra.mxu0 0
        %467 = vmatprep.subr.bf16.mxu0 0
        %468 = vmatpush1.bf16.msra.mxu0 0
        %469 = vmatprep.subr.bf16.mxu0 0
        %470 = vmatpush1.bf16.msra.mxu0 0
        %471 = vmatprep.subr.bf16.mxu0 0
        %472 = vmatpush1.bf16.msra.mxu0 0
        %473 = vmatprep.subr.bf16.mxu0 0
        %474 = vmatpush1.bf16.msra.mxu0 0
        %475 = vmatprep.subr.bf16.mxu0 0
        %476 = vmatpush1.bf16.msra.mxu0 0
        %477 = vmatprep.subr.bf16.mxu0 0
        %478 = vmatpush1.bf16.msra.mxu0 0
        %479 = vmatprep.mubr.bf16.mxu0 0
        %480 = vmatmul.mubr.bf16.gmra.mrb[0].mxu0 %v226
        %v481 = vpop.f32.mrb[0].mxu0
        %v482 = vadd.f32 %v272, %v481
        %v483 = vpop.f32.mrb[0].mxu0
        %v484 = vpop.f32.mrb[0].mxu0
        %v485 = vadd.f32 %v272, %v484
        %v486 = vpop.f32.mrb[0].mxu0
        %487 = vdwg.mxu0
        %v488 = vld [vmem:[%s3] sm:$0xf]
        %v489 = vld [vmem:[%s3 + $0x4] sm:$0xf]
        %v490 = vld [vmem:[%s3 + $0x8] sm:$0xf]
        %v491 = vld [vmem:[%s3 + $0xc] sm:$0xf]
        %v492 = vld [vmem:[%s3 + $0x10] sm:$0xf]
        %v493 = vld [vmem:[%s3 + $0x14] sm:$0xf]
        %v494 = vld [vmem:[%s3 + $0x18] sm:$0xf]
        %v495 = vld [vmem:[%s3 + $0x1c] sm:$0xf]
        %v496 = vld [vmem:[%s3 + $0x20] sm:$0xf]
        %v497 = vld [vmem:[%s3 + $0x24] sm:$0xf]
        %v498 = vld [vmem:[%s3 + $0x28] sm:$0xf]
        %v499 = vld [vmem:[%s3 + $0x2c] sm:$0xf]
        %v500 = vld [vmem:[%s3 + $0x30] sm:$0xf]
        %v501 = vld [vmem:[%s3 + $0x34] sm:$0xf]
        %v502 = vld [vmem:[%s3 + $0x38] sm:$0xf]
        %v503 = vld [vmem:[%s3 + $0x3c] sm:$0xf]
        %v504 = vmul.f32 %v439, 0.17677669
        %v505 = vmul.f32 %v443, 0.17677669
        %vm506 = vcmask 261120
        %v508 = vsel %vm506, %v504, 0
        %v511 = vsel %vm506, %v505, 0
        %v514 = vsel %vm506, %v441, 0
        %v517 = vsel %vm506, %v445, 0
        %519 = vmatprep.subr.mxu0 0.0
        %520 = vmatpush1.xpose.msra.mxu0 %v514
        %521 = vmatprep.subr.mxu0 0.0
        %522 = vmatpush1.xpose.msra.mxu0 %v517
        %523 = vmatprep.subr.mxu0 0.0
        %524 = vmatpush1.xpose.msra.mxu0 0.0
        %525 = vmatprep.subr.mxu0 0.0
        %526 = vmatpush1.xpose.msra.mxu0 0.0
        %527 = vmatprep.subr.mxu0 0.0
        %528 = vmatpush1.xpose.msra.mxu0 0.0
        %529 = vmatprep.subr.mxu0 0.0
        %530 = vmatpush1.xpose.msra.mxu0 0.0
        %531 = vmatprep.subr.mxu0 0.0
        %532 = vmatpush1.xpose.msra.mxu0 0.0
        %533 = vmatprep.subr.mxu0 0.0
        %534 = vmatpush1.xpose.msra.mxu0 0.0
        %535 = vmatprep.subr.mxu0 0.0
        %536 = vmatpush1.xpose.msra.mxu0 0.0
        %537 = vmatprep.subr.mxu0 0.0
        %538 = vmatpush1.xpose.msra.mxu0 0.0
        %539 = vmatprep.subr.mxu0 0.0
        %540 = vmatpush1.xpose.msra.mxu0 0.0
        %541 = vmatprep.subr.mxu0 0.0
        %542 = vmatpush1.xpose.msra.mxu0 0.0
        %543 = vmatprep.subr.mxu0 0.0
        %544 = vmatpush1.xpose.msra.mxu0 0.0
        %545 = vmatprep.subr.mxu0 0.0
        %546 = vmatpush1.xpose.msra.mxu0 0.0
        %547 = vmatprep.subr.mxu0 0.0
        %548 = vmatpush1.xpose.msra.mxu0 0.0
        %549 = vmatprep.subr.mxu0 0.0
        %550 = vmatpush1.xpose.msra.mxu0 0.0
        %551 = vmatprep.subr.mxu0 0.0
        %552 = vmatpush1.xpose.msra.mxu0 0.0
        %553 = vmatprep.subr.mxu0 0.0
        %554 = vmatpush1.xpose.msra.mxu0 0.0
        %555 = vmatprep.subr.mxu0 0.0
        %556 = vmatpush1.xpose.msra.mxu0 0.0
        %557 = vmatprep.subr.mxu0 0.0
        %558 = vmatpush1.xpose.msra.mxu0 0.0
        %559 = vmatprep.subr.mxu0 0.0
        %560 = vmatpush1.xpose.msra.mxu0 0.0
        %561 = vmatprep.subr.mxu0 0.0
        %562 = vmatpush1.xpose.msra.mxu0 0.0
        %563 = vmatprep.subr.mxu0 0.0
        %564 = vmatpush1.xpose.msra.mxu0 0.0
        %565 = vmatprep.subr.mxu0 0.0
        %566 = vmatpush1.xpose.msra.mxu0 0.0
        %567 = vmatprep.subr.mxu0 0.0
        %568 = vmatpush1.xpose.msra.mxu0 0.0
        %569 = vmatprep.subr.mxu0 0.0
        %570 = vmatpush1.xpose.msra.mxu0 0.0
        %571 = vmatprep.subr.mxu0 0.0
        %572 = vmatpush1.xpose.msra.mxu0 0.0
        %573 = vmatprep.subr.mxu0 0.0
        %574 = vmatpush1.xpose.msra.mxu0 0.0
        %575 = vmatprep.subr.mxu0 0.0
        %576 = vmatpush1.xpose.msra.mxu0 0.0
        %577 = vmatprep.subr.mxu0 0.0
        %578 = vmatpush1.xpose.msra.mxu0 0.0
        %579 = vmatprep.subr.mxu0 0.0
        %580 = vmatpush1.xpose.msra.mxu0 0.0
        %581 = vmatprep.subr.mxu0 0.0
        %582 = vmatpush1.xpose.msra.mxu0 0.0
        %583 = vmatprep.mubr.f32.mxu0 0.0
        %584 = vmatmul.mubr.f32.gmra.mrb[0].mxu0 %v508
        %v585 = vpop.f32.mrb[0].mxu0
        %v586 = vadd.f32 0.0, %v585
        %v587 = vpop.f32.mrb[0].mxu0
        %588 = vmatprep.mubr.f32.mxu0 0.0
        %589 = vmatmul.mubr.f32.gmra.mrb[0].mxu0 %v511
        %v590 = vpop.f32.mrb[0].mxu0
        %v591 = vadd.f32 0.0, %v590
        %v592 = vpop.f32.mrb[0].mxu0
        %593 = vdwg.mxu0
        %vm594 = vcmask 130048
        %v595 = vsel %vm594, %v586, -inf
        %596 = vmax.xlane.f32.xlu0 %v595
        %v597 = vpop.xlane.xlu0 %596
        %v598 = vsel %vm594, %v591, -inf
        %599 = vmax.xlane.f32.xlu0 %v598
        %v600 = vpop.xlane.xlu0 %599
        %v601 = vsub.f32 %v586, %v597
        %v602 = vsub.f32 %v591, %v600
        %v603 = vmul.f32 %v601, 1.442695
        %v604 = vpow.pop %v603
        %v605 = vmul.f32 %v602, 1.442695
        %v606 = vpow.pop %v605
        %v607 = vsel %vm594, %v604, 0.0
        %608 = vadd.xlane.f32.xlu0 %v607
        %v609 = vpop.xlane.xlu0 %608
        %v610 = vsel %vm594, %v606, 0.0
        %611 = vadd.xlane.f32.xlu0 %v610
        %v612 = vpop.xlane.xlu0 %611
        %v613 = vrcp.pop %v609
        %v614 = vrcp.pop %v612
        %v616 = vsel %vm594, %v604, 0
        %v619 = vsel %vm594, %v606, 0
        %621 = vmatprep.subr.mxu0 0.0
        %622 = vmatpush1.msra.mxu0 %v482
        %623 = vmatprep.subr.mxu0 0.0
        %624 = vmatpush1.msra.mxu0 %v485
        %625 = vmatprep.subr.mxu0 0.0
        %626 = vmatpush1.msra.mxu0 0.0
        %627 = vmatprep.subr.mxu0 0.0
        %628 = vmatpush1.msra.mxu0 0.0
        %629 = vmatprep.subr.mxu0 0.0
        %630 = vmatpush1.msra.mxu0 0.0
        %631 = vmatprep.subr.mxu0 0.0
        %632 = vmatpush1.msra.mxu0 0.0
        %633 = vmatprep.subr.mxu0 0.0
        %634 = vmatpush1.msra.mxu0 0.0
        %635 = vmatprep.subr.mxu0 0.0
        %636 = vmatpush1.msra.mxu0 0.0
        %637 = vmatprep.subr.mxu0 0.0
        %638 = vmatpush1.msra.mxu0 0.0
        %639 = vmatprep.subr.mxu0 0.0
        %640 = vmatpush1.msra.mxu0 0.0
        %641 = vmatprep.subr.mxu0 0.0
        %642 = vmatpush1.msra.mxu0 0.0
        %643 = vmatprep.subr.mxu0 0.0
        %644 = vmatpush1.msra.mxu0 0.0
        %645 = vmatprep.subr.mxu0 0.0
        %646 = vmatpush1.msra.mxu0 0.0
        %647 = vmatprep.subr.mxu0 0.0
        %648 = vmatpush1.msra.mxu0 0.0
        %649 = vmatprep.subr.mxu0 0.0
        %650 = vmatpush1.msra.mxu0 0.0
        %651 = vmatprep.subr.mxu0 0.0
        %652 = vmatpush1.msra.mxu0 0.0
        %653 = vmatprep.subr.mxu0 0.0
        %654 = vmatpush1.msra.mxu0 0.0
        %655 = vmatprep.subr.mxu0 0.0
        %656 = vmatpush1.msra.mxu0 0.0
        %657 = vmatprep.subr.mxu0 0.0
        %658 = vmatpush1.msra.mxu0 0.0
        %659 = vmatprep.subr.mxu0 0.0
        %660 = vmatpush1.msra.mxu0 0.0
        %661 = vmatprep.subr.mxu0 0.0
        %662 = vmatpush1.msra.mxu0 0.0
        %663 = vmatprep.subr.mxu0 0.0
        %664 = vmatpush1.msra.mxu0 0.0
        %665 = vmatprep.subr.mxu0 0.0
        %666 = vmatpush1.msra.mxu0 0.0
        %667 = vmatprep.subr.mxu0 0.0
        %668 = vmatpush1.msra.mxu0 0.0
        %669 = vmatprep.subr.mxu0 0.0
        %670 = vmatpush1.msra.mxu0 0.0
        %671 = vmatprep.subr.mxu0 0.0
        %672 = vmatpush1.msra.mxu0 0.0
        %673 = vmatprep.subr.mxu0 0.0
        %674 = vmatpush1.msra.mxu0 0.0
        %675 = vmatprep.subr.mxu0 0.0
        %676 = vmatpush1.msra.mxu0 0.0
        %677 = vmatprep.subr.mxu0 0.0
        %678 = vmatpush1.msra.mxu0 0.0
        %679 = vmatprep.subr.mxu0 0.0
        %680 = vmatpush1.msra.mxu0 0.0
        %681 = vmatprep.subr.mxu0 0.0
        %682 = vmatpush1.msra.mxu0 0.0
        %683 = vmatprep.subr.mxu0 0.0
        %684 = vmatpush1.msra.mxu0 0.0
        %685 = vmatprep.mubr.f32.mxu0 0.0
        %686 = vmatmul.mubr.f32.gmra.mrb[0].mxu0 %v616
        %v687 = vpop.f32.mrb[0].mxu0
        %v688 = vadd.f32 0.0, %v687
        %v689 = vpop.f32.mrb[0].mxu0
        %690 = vmatprep.mubr.f32.mxu0 0.0
        %691 = vmatmul.mubr.f32.gmra.mrb[0].mxu0 %v619
        %v692 = vpop.f32.mrb[0].mxu0
        %v693 = vadd.f32 0.0, %v692
        %v694 = vpop.f32.mrb[0].mxu0
        %695 = vdwg.mxu0
        %v696 = vmul.f32 %v688, %v613
        %v697 = vmul.f32 %v693, %v614
        %v698 = vpack.c.bf16 %v697, %v696
        %699 = vrot.lane.b32.xlu0 %v504, 96
        %v700 = vpop.permute.xlu0 %699
        %701 = vrot.lane.b32.xlu0 %v505, 96
        %v702 = vpop.permute.xlu0 %701
        %703 = vrot.lane.b32.xlu0 %v441, 96
        %v704 = vpop.permute.xlu0 %703
        %705 = vrot.lane.b32.xlu0 %v445, 96
        %v706 = vpop.permute.xlu0 %705
        %v707 = vsel %vm506, %v700, 0
        %v709 = vsel %vm506, %v702, 0
        %v711 = vsel %vm506, %v704, 0
        %v713 = vsel %vm506, %v706, 0
        %715 = vmatprep.subr.mxu0 0.0
        %716 = vmatpush1.xpose.msra.mxu0 %v711
        %717 = vmatprep.subr.mxu0 0.0
        %718 = vmatpush1.xpose.msra.mxu0 %v713
        %719 = vmatprep.subr.mxu0 0.0
        %720 = vmatpush1.xpose.msra.mxu0 0.0
        %721 = vmatprep.subr.mxu0 0.0
        %722 = vmatpush1.xpose.msra.mxu0 0.0
        %723 = vmatprep.subr.mxu0 0.0
        %724 = vmatpush1.xpose.msra.mxu0 0.0
        %725 = vmatprep.subr.mxu0 0.0
        %726 = vmatpush1.xpose.msra.mxu0 0.0
        %727 = vmatprep.subr.mxu0 0.0
        %728 = vmatpush1.xpose.msra.mxu0 0.0
        %729 = vmatprep.subr.mxu0 0.0
        %730 = vmatpush1.xpose.msra.mxu0 0.0
        %731 = vmatprep.subr.mxu0 0.0
        %732 = vmatpush1.xpose.msra.mxu0 0.0
        %733 = vmatprep.subr.mxu0 0.0
        %734 = vmatpush1.xpose.msra.mxu0 0.0
        %735 = vmatprep.subr.mxu0 0.0
        %736 = vmatpush1.xpose.msra.mxu0 0.0
        %737 = vmatprep.subr.mxu0 0.0
        %738 = vmatpush1.xpose.msra.mxu0 0.0
        %739 = vmatprep.subr.mxu0 0.0
        %740 = vmatpush1.xpose.msra.mxu0 0.0
        %741 = vmatprep.subr.mxu0 0.0
        %742 = vmatpush1.xpose.msra.mxu0 0.0
        %743 = vmatprep.subr.mxu0 0.0
        %744 = vmatpush1.xpose.msra.mxu0 0.0
        %745 = vmatprep.subr.mxu0 0.0
        %746 = vmatpush1.xpose.msra.mxu0 0.0
        %747 = vmatprep.subr.mxu0 0.0
        %748 = vmatpush1.xpose.msra.mxu0 0.0
        %749 = vmatprep.subr.mxu0 0.0
        %750 = vmatpush1.xpose.msra.mxu0 0.0
        %751 = vmatprep.subr.mxu0 0.0
        %752 = vmatpush1.xpose.msra.mxu0 0.0
        %753 = vmatprep.subr.mxu0 0.0
        %754 = vmatpush1.xpose.msra.mxu0 0.0
        %755 = vmatprep.subr.mxu0 0.0
        %756 = vmatpush1.xpose.msra.mxu0 0.0
        %757 = vmatprep.subr.mxu0 0.0
        %758 = vmatpush1.xpose.msra.mxu0 0.0
        %759 = vmatprep.subr.mxu0 0.0
        %760 = vmatpush1.xpose.msra.mxu0 0.0
        %761 = vmatprep.subr.mxu0 0.0
        %762 = vmatpush1.xpose.msra.mxu0 0.0
        %763 = vmatprep.subr.mxu0 0.0
        %764 = vmatpush1.xpose.msra.mxu0 0.0
        %765 = vmatprep.subr.mxu0 0.0
        %766 = vmatpush1.xpose.msra.mxu0 0.0
        %767 = vmatprep.subr.mxu0 0.0
        %768 = vmatpush1.xpose.msra.mxu0 0.0
        %769 = vmatprep.subr.mxu0 0.0
        %770 = vmatpush1.xpose.msra.mxu0 0.0
        %771 = vmatprep.subr.mxu0 0.0
        %772 = vmatpush1.xpose.msra.mxu0 0.0
        %773 = vmatprep.subr.mxu0 0.0
        %774 = vmatpush1.xpose.msra.mxu0 0.0
        %775 = vmatprep.subr.mxu0 0.0
        %776 = vmatpush1.xpose.msra.mxu0 0.0
        %777 = vmatprep.subr.mxu0 0.0
        %778 = vmatpush1.xpose.msra.mxu0 0.0
        %779 = vmatprep.mubr.f32.mxu0 0.0
        %780 = vmatmul.mubr.f32.gmra.mrb[0].mxu0 %v707
        %v781 = vpop.f32.mrb[0].mxu0
        %v782 = vadd.f32 0.0, %v781
        %v783 = vpop.f32.mrb[0].mxu0
        %784 = vmatprep.mubr.f32.mxu0 0.0
        %785 = vmatmul.mubr.f32.gmra.mrb[0].mxu0 %v709
        %v786 = vpop.f32.mrb[0].mxu0
        %v787 = vadd.f32 0.0, %v786
        %v788 = vpop.f32.mrb[0].mxu0
        %789 = vdwg.mxu0
        %v790 = vsel %vm594, %v782, -inf
        %791 = vmax.xlane.f32.xlu0 %v790
        %v792 = vpop.xlane.xlu0 %791
        %v793 = vsel %vm594, %v787, -inf
        %794 = vmax.xlane.f32.xlu0 %v793
        %v795 = vpop.xlane.xlu0 %794
        %v796 = vsub.f32 %v782, %v792
        %v797 = vsub.f32 %v787, %v795
        %v798 = vmul.f32 %v796, 1.442695
        %v799 = vpow.pop %v798
        %v800 = vmul.f32 %v797, 1.442695
        %v801 = vpow.pop %v800
        %v802 = vsel %vm594, %v799, 0.0
        %803 = vadd.xlane.f32.xlu0 %v802
        %v804 = vpop.xlane.xlu0 %803
        %v805 = vsel %vm594, %v801, 0.0
        %806 = vadd.xlane.f32.xlu0 %v805
        %v807 = vpop.xlane.xlu0 %806
        %v808 = vrcp.pop %v804
        %v809 = vrcp.pop %v807
        %812 = vrot.lane.b32.xlu0 %v482, 96
        %v813 = vpop.permute.xlu0 %812
        %814 = vrot.lane.b32.xlu0 %v485, 96
        %v815 = vpop.permute.xlu0 %814
        %v819 = vsel %vm594, %v799, 0
        %v822 = vsel %vm594, %v801, 0
        %824 = vmatprep.subr.mxu0 0.0
        %825 = vmatpush1.msra.mxu0 %v813
        %826 = vmatprep.subr.mxu0 0.0
        %827 = vmatpush1.msra.mxu0 %v815
        %828 = vmatprep.subr.mxu0 0.0
        %829 = vmatpush1.msra.mxu0 0.0
        %830 = vmatprep.subr.mxu0 0.0
        %831 = vmatpush1.msra.mxu0 0.0
        %832 = vmatprep.subr.mxu0 0.0
        %833 = vmatpush1.msra.mxu0 0.0
        %834 = vmatprep.subr.mxu0 0.0
        %835 = vmatpush1.msra.mxu0 0.0
        %836 = vmatprep.subr.mxu0 0.0
        %837 = vmatpush1.msra.mxu0 0.0
        %838 = vmatprep.subr.mxu0 0.0
        %839 = vmatpush1.msra.mxu0 0.0
        %840 = vmatprep.subr.mxu0 0.0
        %841 = vmatpush1.msra.mxu0 0.0
        %842 = vmatprep.subr.mxu0 0.0
        %843 = vmatpush1.msra.mxu0 0.0
        %844 = vmatprep.subr.mxu0 0.0
        %845 = vmatpush1.msra.mxu0 0.0
        %846 = vmatprep.subr.mxu0 0.0
        %847 = vmatpush1.msra.mxu0 0.0
        %848 = vmatprep.subr.mxu0 0.0
        %849 = vmatpush1.msra.mxu0 0.0
        %850 = vmatprep.subr.mxu0 0.0
        %851 = vmatpush1.msra.mxu0 0.0
        %852 = vmatprep.subr.mxu0 0.0
        %853 = vmatpush1.msra.mxu0 0.0
        %854 = vmatprep.subr.mxu0 0.0
        %855 = vmatpush1.msra.mxu0 0.0
        %856 = vmatprep.subr.mxu0 0.0
        %857 = vmatpush1.msra.mxu0 0.0
        %858 = vmatprep.subr.mxu0 0.0
        %859 = vmatpush1.msra.mxu0 0.0
        %860 = vmatprep.subr.mxu0 0.0
        %861 = vmatpush1.msra.mxu0 0.0
        %862 = vmatprep.subr.mxu0 0.0
        %863 = vmatpush1.msra.mxu0 0.0
        %864 = vmatprep.subr.mxu0 0.0
        %865 = vmatpush1.msra.mxu0 0.0
        %866 = vmatprep.subr.mxu0 0.0
        %867 = vmatpush1.msra.mxu0 0.0
        %868 = vmatprep.subr.mxu0 0.0
        %869 = vmatpush1.msra.mxu0 0.0
        %870 = vmatprep.subr.mxu0 0.0
        %871 = vmatpush1.msra.mxu0 0.0
        %872 = vmatprep.subr.mxu0 0.0
        %873 = vmatpush1.msra.mxu0 0.0
        %874 = vmatprep.subr.mxu0 0.0
        %875 = vmatpush1.msra.mxu0 0.0
        %876 = vmatprep.subr.mxu0 0.0
        %877 = vmatpush1.msra.mxu0 0.0
        %878 = vmatprep.subr.mxu0 0.0
        %879 = vmatpush1.msra.mxu0 0.0
        %880 = vmatprep.subr.mxu0 0.0
        %881 = vmatpush1.msra.mxu0 0.0
        %882 = vmatprep.subr.mxu0 0.0
        %883 = vmatpush1.msra.mxu0 0.0
        %884 = vmatprep.subr.mxu0 0.0
        %885 = vmatpush1.msra.mxu0 0.0
        %886 = vmatprep.subr.mxu0 0.0
        %887 = vmatpush1.msra.mxu0 0.0
        %888 = vmatprep.mubr.f32.mxu0 0.0
        %889 = vmatmul.mubr.f32.gmra.mrb[0].mxu0 %v819
        %v890 = vpop.f32.mrb[0].mxu0
        %v891 = vadd.f32 0.0, %v890
        %v892 = vpop.f32.mrb[0].mxu0
        %893 = vmatprep.mubr.f32.mxu0 0.0
        %894 = vmatmul.mubr.f32.gmra.mrb[0].mxu0 %v822
        %v895 = vpop.f32.mrb[0].mxu0
        %v896 = vadd.f32 0.0, %v895
        %v897 = vpop.f32.mrb[0].mxu0
        %898 = vdwg.mxu0
        %v899 = vmul.f32 %v891, %v808
        %v900 = vmul.f32 %v896, %v809
        %v901 = vpack.c.bf16 %v900, %v899
        %v906 = vunpack.c.l.b16 %v492
        %v907 = vunpack.c.l.b16 %v493
        %v908 = vunpack.c.l.b16 %v494
        %v909 = vunpack.c.l.b16 %v495
        %v910 = vpack.c.b16 %v907, %v906
        %v911 = vpack.c.b16 %v909, %v908
        %v915 = vsel %vm506, %v901, 0
        %917 = vmatprep.subr.bf16.mxu0 0
        %918 = vmatpush1.bf16.msra.mxu0 %v910
        %919 = vmatprep.subr.bf16.mxu0 0
        %920 = vmatpush1.bf16.msra.mxu0 %v911
        %921 = vmatprep.subr.bf16.mxu0 0
        %922 = vmatpush1.bf16.msra.mxu0 0
        %923 = vmatprep.subr.bf16.mxu0 0
        %924 = vmatpush1.bf16.msra.mxu0 0
        %925 = vmatprep.subr.bf16.mxu0 0
        %926 = vmatpush1.bf16.msra.mxu0 0
        %927 = vmatprep.subr.bf16.mxu0 0
        %928 = vmatpush1.bf16.msra.mxu0 0
        %929 = vmatprep.subr.bf16.mxu0 0
        %930 = vmatpush1.bf16.msra.mxu0 0
        %931 = vmatprep.subr.bf16.mxu0 0
        %932 = vmatpush1.bf16.msra.mxu0 0
        %933 = vmatprep.subr.bf16.mxu0 0
        %934 = vmatpush1.bf16.msra.mxu0 0
        %935 = vmatprep.subr.bf16.mxu0 0
        %936 = vmatpush1.bf16.msra.mxu0 0
        %937 = vmatprep.subr.bf16.mxu0 0
        %938 = vmatpush1.bf16.msra.mxu0 0
        %939 = vmatprep.subr.bf16.mxu0 0
        %940 = vmatpush1.bf16.msra.mxu0 0
        %941 = vmatprep.subr.bf16.mxu0 0
        %942 = vmatpush1.bf16.msra.mxu0 0
        %943 = vmatprep.subr.bf16.mxu0 0
        %944 = vmatpush1.bf16.msra.mxu0 0
        %945 = vmatprep.subr.bf16.mxu0 0
        %946 = vmatpush1.bf16.msra.mxu0 0
        %947 = vmatprep.subr.bf16.mxu0 0
        %948 = vmatpush1.bf16.msra.mxu0 0
        %949 = vmatprep.mubr.bf16.mxu0 0
        %950 = vmatmul.mubr.bf16.gmra.mrb[0].mxu0 %v915
        %v951 = vpop.f32.mrb[0].mxu0
        %v952 = vadd.f32 0.0, %v951
        %v953 = vpop.f32.mrb[0].mxu0
        %v954 = vpop.f32.mrb[0].mxu0
        %v955 = vadd.f32 0.0, %v954
        %v956 = vpop.f32.mrb[0].mxu0
        %957 = vdwg.mxu0
        %v962 = vunpack.c.l.b16 %v488
        %v963 = vunpack.c.l.b16 %v489
        %v964 = vunpack.c.l.b16 %v490
        %v965 = vunpack.c.l.b16 %v491
        %v966 = vpack.c.b16 %v963, %v962
        %v967 = vpack.c.b16 %v965, %v964
        %v971 = vsel %vm506, %v698, 0
        %973 = vmatprep.subr.bf16.mxu0 0
        %974 = vmatpush1.bf16.msra.mxu0 %v966
        %975 = vmatprep.subr.bf16.mxu0 0
        %976 = vmatpush1.bf16.msra.mxu0 %v967
        %977 = vmatprep.subr.bf16.mxu0 0
        %978 = vmatpush1.bf16.msra.mxu0 0
        %979 = vmatprep.subr.bf16.mxu0 0
        %980 = vmatpush1.bf16.msra.mxu0 0
        %981 = vmatprep.subr.bf16.mxu0 0
        %982 = vmatpush1.bf16.msra.mxu0 0
        %983 = vmatprep.subr.bf16.mxu0 0
        %984 = vmatpush1.bf16.msra.mxu0 0
        %985 = vmatprep.subr.bf16.mxu0 0
        %986 = vmatpush1.bf16.msra.mxu0 0
        %987 = vmatprep.subr.bf16.mxu0 0
        %988 = vmatpush1.bf16.msra.mxu0 0
        %989 = vmatprep.subr.bf16.mxu0 0
        %990 = vmatpush1.bf16.msra.mxu0 0
        %991 = vmatprep.subr.bf16.mxu0 0
        %992 = vmatpush1.bf16.msra.mxu0 0
        %993 = vmatprep.subr.bf16.mxu0 0
        %994 = vmatpush1.bf16.msra.mxu0 0
        %995 = vmatprep.subr.bf16.mxu0 0
        %996 = vmatpush1.bf16.msra.mxu0 0
        %997 = vmatprep.subr.bf16.mxu0 0
        %998 = vmatpush1.bf16.msra.mxu0 0
        %999 = vmatprep.subr.bf16.mxu0 0
        %1000 = vmatpush1.bf16.msra.mxu0 0
        %1001 = vmatprep.subr.bf16.mxu0 0
        %1002 = vmatpush1.bf16.msra.mxu0 0
        %1003 = vmatprep.subr.bf16.mxu0 0
        %1004 = vmatpush1.bf16.msra.mxu0 0
        %1005 = vmatprep.mubr.bf16.mxu0 0
        %1006 = vmatmul.mubr.bf16.gmra.mrb[0].mxu0 %v971
        %v1007 = vpop.f32.mrb[0].mxu0
        %v1008 = vadd.f32 %v952, %v1007
        %v1009 = vpop.f32.mrb[0].mxu0
        %v1010 = vpop.f32.mrb[0].mxu0
        %v1011 = vadd.f32 %v955, %v1010
        %v1012 = vpop.f32.mrb[0].mxu0
        %1013 = vdwg.mxu0
        %1014 = vrot.lane.b32.xlu0 %v504, 64
        %v1015 = vpop.permute.xlu0 %1014
        %1016 = vrot.lane.b32.xlu0 %v505, 64
        %v1017 = vpop.permute.xlu0 %1016
        %1018 = vrot.lane.b32.xlu0 %v441, 64
        %v1019 = vpop.permute.xlu0 %1018
        %1020 = vrot.lane.b32.xlu0 %v445, 64
        %v1021 = vpop.permute.xlu0 %1020
        %v1022 = vsel %vm506, %v1015, 0
        %v1024 = vsel %vm506, %v1017, 0
        %v1026 = vsel %vm506, %v1019, 0
        %v1028 = vsel %vm506, %v1021, 0
        %1030 = vmatprep.subr.mxu0 0.0
        %1031 = vmatpush1.xpose.msra.mxu0 %v1026
        %1032 = vmatprep.subr.mxu0 0.0
        %1033 = vmatpush1.xpose.msra.mxu0 %v1028
        %1034 = vmatprep.subr.mxu0 0.0
        %1035 = vmatpush1.xpose.msra.mxu0 0.0
        %1036 = vmatprep.subr.mxu0 0.0
        %1037 = vmatpush1.xpose.msra.mxu0 0.0
        %1038 = vmatprep.subr.mxu0 0.0
        %1039 = vmatpush1.xpose.msra.mxu0 0.0
        %1040 = vmatprep.subr.mxu0 0.0
        %1041 = vmatpush1.xpose.msra.mxu0 0.0
        %1042 = vmatprep.subr.mxu0 0.0
        %1043 = vmatpush1.xpose.msra.mxu0 0.0
        %1044 = vmatprep.subr.mxu0 0.0
        %1045 = vmatpush1.xpose.msra.mxu0 0.0
        %1046 = vmatprep.subr.mxu0 0.0
        %1047 = vmatpush1.xpose.msra.mxu0 0.0
        %1048 = vmatprep.subr.mxu0 0.0
        %1049 = vmatpush1.xpose.msra.mxu0 0.0
        %1050 = vmatprep.subr.mxu0 0.0
        %1051 = vmatpush1.xpose.msra.mxu0 0.0
        %1052 = vmatprep.subr.mxu0 0.0
        %1053 = vmatpush1.xpose.msra.mxu0 0.0
        %1054 = vmatprep.subr.mxu0 0.0
        %1055 = vmatpush1.xpose.msra.mxu0 0.0
        %1056 = vmatprep.subr.mxu0 0.0
        %1057 = vmatpush1.xpose.msra.mxu0 0.0
        %1058 = vmatprep.subr.mxu0 0.0
        %1059 = vmatpush1.xpose.msra.mxu0 0.0
        %1060 = vmatprep.subr.mxu0 0.0
        %1061 = vmatpush1.xpose.msra.mxu0 0.0
        %1062 = vmatprep.subr.mxu0 0.0
        %1063 = vmatpush1.xpose.msra.mxu0 0.0
        %1064 = vmatprep.subr.mxu0 0.0
        %1065 = vmatpush1.xpose.msra.mxu0 0.0
        %1066 = vmatprep.subr.mxu0 0.0
        %1067 = vmatpush1.xpose.msra.mxu0 0.0
        %1068 = vmatprep.subr.mxu0 0.0
        %1069 = vmatpush1.xpose.msra.mxu0 0.0
        %1070 = vmatprep.subr.mxu0 0.0
        %1071 = vmatpush1.xpose.msra.mxu0 0.0
        %1072 = vmatprep.subr.mxu0 0.0
        %1073 = vmatpush1.xpose.msra.mxu0 0.0
        %1074 = vmatprep.subr.mxu0 0.0
        %1075 = vmatpush1.xpose.msra.mxu0 0.0
        %1076 = vmatprep.subr.mxu0 0.0
        %1077 = vmatpush1.xpose.msra.mxu0 0.0
        %1078 = vmatprep.subr.mxu0 0.0
        %1079 = vmatpush1.xpose.msra.mxu0 0.0
        %1080 = vmatprep.subr.mxu0 0.0
        %1081 = vmatpush1.xpose.msra.mxu0 0.0
        %1082 = vmatprep.subr.mxu0 0.0
        %1083 = vmatpush1.xpose.msra.mxu0 0.0
        %1084 = vmatprep.subr.mxu0 0.0
        %1085 = vmatpush1.xpose.msra.mxu0 0.0
        %1086 = vmatprep.subr.mxu0 0.0
        %1087 = vmatpush1.xpose.msra.mxu0 0.0
        %1088 = vmatprep.subr.mxu0 0.0
        %1089 = vmatpush1.xpose.msra.mxu0 0.0
        %1090 = vmatprep.subr.mxu0 0.0
        %1091 = vmatpush1.xpose.msra.mxu0 0.0
        %1092 = vmatprep.subr.mxu0 0.0
        %1093 = vmatpush1.xpose.msra.mxu0 0.0
        %1094 = vmatprep.mubr.f32.mxu0 0.0
        %1095 = vmatmul.mubr.f32.gmra.mrb[0].mxu0 %v1022
        %v1096 = vpop.f32.mrb[0].mxu0
        %v1097 = vadd.f32 0.0, %v1096
        %v1098 = vpop.f32.mrb[0].mxu0
        %1099 = vmatprep.mubr.f32.mxu0 0.0
        %1100 = vmatmul.mubr.f32.gmra.mrb[0].mxu0 %v1024
        %v1101 = vpop.f32.mrb[0].mxu0
        %v1102 = vadd.f32 0.0, %v1101
        %v1103 = vpop.f32.mrb[0].mxu0
        %1104 = vdwg.mxu0
        %v1105 = vsel %vm594, %v1097, -inf
        %1106 = vmax.xlane.f32.xlu0 %v1105
        %v1107 = vpop.xlane.xlu0 %1106
        %v1108 = vsel %vm594, %v1102, -inf
        %1109 = vmax.xlane.f32.xlu0 %v1108
        %v1110 = vpop.xlane.xlu0 %1109
        %v1111 = vsub.f32 %v1097, %v1107
        %v1112 = vsub.f32 %v1102, %v1110
        %v1113 = vmul.f32 %v1111, 1.442695
        %v1114 = vpow.pop %v1113
        %v1115 = vmul.f32 %v1112, 1.442695
        %v1116 = vpow.pop %v1115
        %v1117 = vsel %vm594, %v1114, 0.0
        %1118 = vadd.xlane.f32.xlu0 %v1117
        %v1119 = vpop.xlane.xlu0 %1118
        %v1120 = vsel %vm594, %v1116, 0.0
        %1121 = vadd.xlane.f32.xlu0 %v1120
        %v1122 = vpop.xlane.xlu0 %1121
        %v1123 = vrcp.pop %v1119
        %v1124 = vrcp.pop %v1122
        %1125 = vrot.lane.b32.xlu0 %v482, 64
        %v1126 = vpop.permute.xlu0 %1125
        %1127 = vrot.lane.b32.xlu0 %v485, 64
        %v1128 = vpop.permute.xlu0 %1127
        %v1132 = vsel %vm594, %v1114, 0
        %v1135 = vsel %vm594, %v1116, 0
        %1137 = vmatprep.subr.mxu0 0.0
        %1138 = vmatpush1.msra.mxu0 %v1126
        %1139 = vmatprep.subr.mxu0 0.0
        %1140 = vmatpush1.msra.mxu0 %v1128
        %1141 = vmatprep.subr.mxu0 0.0
        %1142 = vmatpush1.msra.mxu0 0.0
        %1143 = vmatprep.subr.mxu0 0.0
        %1144 = vmatpush1.msra.mxu0 0.0
        %1145 = vmatprep.subr.mxu0 0.0
        %1146 = vmatpush1.msra.mxu0 0.0
        %1147 = vmatprep.subr.mxu0 0.0
        %1148 = vmatpush1.msra.mxu0 0.0
        %1149 = vmatprep.subr.mxu0 0.0
        %1150 = vmatpush1.msra.mxu0 0.0
        %1151 = vmatprep.subr.mxu0 0.0
        %1152 = vmatpush1.msra.mxu0 0.0
        %1153 = vmatprep.subr.mxu0 0.0
        %1154 = vmatpush1.msra.mxu0 0.0
        %1155 = vmatprep.subr.mxu0 0.0
        %1156 = vmatpush1.msra.mxu0 0.0
        %1157 = vmatprep.subr.mxu0 0.0
        %1158 = vmatpush1.msra.mxu0 0.0
        %1159 = vmatprep.subr.mxu0 0.0
        %1160 = vmatpush1.msra.mxu0 0.0
        %1161 = vmatprep.subr.mxu0 0.0
        %1162 = vmatpush1.msra.mxu0 0.0
        %1163 = vmatprep.subr.mxu0 0.0
        %1164 = vmatpush1.msra.mxu0 0.0
        %1165 = vmatprep.subr.mxu0 0.0
        %1166 = vmatpush1.msra.mxu0 0.0
        %1167 = vmatprep.subr.mxu0 0.0
        %1168 = vmatpush1.msra.mxu0 0.0
        %1169 = vmatprep.subr.mxu0 0.0
        %1170 = vmatpush1.msra.mxu0 0.0
        %1171 = vmatprep.subr.mxu0 0.0
        %1172 = vmatpush1.msra.mxu0 0.0
        %1173 = vmatprep.subr.mxu0 0.0
        %1174 = vmatpush1.msra.mxu0 0.0
        %1175 = vmatprep.subr.mxu0 0.0
        %1176 = vmatpush1.msra.mxu0 0.0
        %1177 = vmatprep.subr.mxu0 0.0
        %1178 = vmatpush1.msra.mxu0 0.0
        %1179 = vmatprep.subr.mxu0 0.0
        %1180 = vmatpush1.msra.mxu0 0.0
        %1181 = vmatprep.subr.mxu0 0.0
        %1182 = vmatpush1.msra.mxu0 0.0
        %1183 = vmatprep.subr.mxu0 0.0
        %1184 = vmatpush1.msra.mxu0 0.0
        %1185 = vmatprep.subr.mxu0 0.0
        %1186 = vmatpush1.msra.mxu0 0.0
        %1187 = vmatprep.subr.mxu0 0.0
        %1188 = vmatpush1.msra.mxu0 0.0
        %1189 = vmatprep.subr.mxu0 0.0
        %1190 = vmatpush1.msra.mxu0 0.0
        %1191 = vmatprep.subr.mxu0 0.0
        %1192 = vmatpush1.msra.mxu0 0.0
        %1193 = vmatprep.subr.mxu0 0.0
        %1194 = vmatpush1.msra.mxu0 0.0
        %1195 = vmatprep.subr.mxu0 0.0
        %1196 = vmatpush1.msra.mxu0 0.0
        %1197 = vmatprep.subr.mxu0 0.0
        %1198 = vmatpush1.msra.mxu0 0.0
        %1199 = vmatprep.subr.mxu0 0.0
        %1200 = vmatpush1.msra.mxu0 0.0
        %1201 = vmatprep.mubr.f32.mxu0 0.0
        %1202 = vmatmul.mubr.f32.gmra.mrb[0].mxu0 %v1132
        %v1203 = vpop.f32.mrb[0].mxu0
        %v1204 = vadd.f32 0.0, %v1203
        %v1205 = vpop.f32.mrb[0].mxu0
        %1206 = vmatprep.mubr.f32.mxu0 0.0
        %1207 = vmatmul.mubr.f32.gmra.mrb[0].mxu0 %v1135
        %v1208 = vpop.f32.mrb[0].mxu0
        %v1209 = vadd.f32 0.0, %v1208
        %v1210 = vpop.f32.mrb[0].mxu0
        %1211 = vdwg.mxu0
        %v1212 = vmul.f32 %v1204, %v1123
        %v1213 = vmul.f32 %v1209, %v1124
        %v1214 = vpack.c.bf16 %v1213, %v1212
        %v1219 = vunpack.c.l.b16 %v496
        %v1220 = vunpack.c.l.b16 %v497
        %v1221 = vunpack.c.l.b16 %v498
        %v1222 = vunpack.c.l.b16 %v499
        %v1223 = vpack.c.b16 %v1220, %v1219
        %v1224 = vpack.c.b16 %v1222, %v1221
        %v1228 = vsel %vm506, %v1214, 0
        %1230 = vmatprep.subr.bf16.mxu0 0
        %1231 = vmatpush1.bf16.msra.mxu0 %v1223
        %1232 = vmatprep.subr.bf16.mxu0 0
        %1233 = vmatpush1.bf16.msra.mxu0 %v1224
        %1234 = vmatprep.subr.bf16.mxu0 0
        %1235 = vmatpush1.bf16.msra.mxu0 0
        %1236 = vmatprep.subr.bf16.mxu0 0
        %1237 = vmatpush1.bf16.msra.mxu0 0
        %1238 = vmatprep.subr.bf16.mxu0 0
        %1239 = vmatpush1.bf16.msra.mxu0 0
        %1240 = vmatprep.subr.bf16.mxu0 0
        %1241 = vmatpush1.bf16.msra.mxu0 0
        %1242 = vmatprep.subr.bf16.mxu0 0
        %1243 = vmatpush1.bf16.msra.mxu0 0
        %1244 = vmatprep.subr.bf16.mxu0 0
        %1245 = vmatpush1.bf16.msra.mxu0 0
        %1246 = vmatprep.subr.bf16.mxu0 0
        %1247 = vmatpush1.bf16.msra.mxu0 0
        %1248 = vmatprep.subr.bf16.mxu0 0
        %1249 = vmatpush1.bf16.msra.mxu0 0
        %1250 = vmatprep.subr.bf16.mxu0 0
        %1251 = vmatpush1.bf16.msra.mxu0 0
        %1252 = vmatprep.subr.bf16.mxu0 0
        %1253 = vmatpush1.bf16.msra.mxu0 0
        %1254 = vmatprep.subr.bf16.mxu0 0
        %1255 = vmatpush1.bf16.msra.mxu0 0
        %1256 = vmatprep.subr.bf16.mxu0 0
        %1257 = vmatpush1.bf16.msra.mxu0 0
        %1258 = vmatprep.subr.bf16.mxu0 0
        %1259 = vmatpush1.bf16.msra.mxu0 0
        %1260 = vmatprep.subr.bf16.mxu0 0
        %1261 = vmatpush1.bf16.msra.mxu0 0
        %1262 = vmatprep.mubr.bf16.mxu0 0
        %1263 = vmatmul.mubr.bf16.gmra.mrb[0].mxu0 %v1228
        %v1264 = vpop.f32.mrb[0].mxu0
        %v1265 = vadd.f32 0.0, %v1264
        %v1266 = vpop.f32.mrb[0].mxu0
        %v1267 = vpop.f32.mrb[0].mxu0
        %v1268 = vadd.f32 0.0, %v1267
        %v1269 = vpop.f32.mrb[0].mxu0
        %1270 = vdwg.mxu0
        %v1271 = vadd.f32 %v1008, %v1265
        %v1272 = vadd.f32 %v1011, %v1268
        %1273 = vrot.lane.b32.xlu0 %v504, 32
        %v1274 = vpop.permute.xlu0 %1273
        %1275 = vrot.lane.b32.xlu0 %v505, 32
        %v1276 = vpop.permute.xlu0 %1275
        %1277 = vrot.lane.b32.xlu0 %v441, 32
        %v1278 = vpop.permute.xlu0 %1277
        %1279 = vrot.lane.b32.xlu0 %v445, 32
        %v1280 = vpop.permute.xlu0 %1279
        %v1281 = vsel %vm506, %v1274, 0
        %v1283 = vsel %vm506, %v1276, 0
        %v1285 = vsel %vm506, %v1278, 0
        %v1287 = vsel %vm506, %v1280, 0
        %1289 = vmatprep.subr.mxu0 0.0
        %1290 = vmatpush1.xpose.msra.mxu0 %v1285
        %1291 = vmatprep.subr.mxu0 0.0
        %1292 = vmatpush1.xpose.msra.mxu0 %v1287
        %1293 = vmatprep.subr.mxu0 0.0
        %1294 = vmatpush1.xpose.msra.mxu0 0.0
        %1295 = vmatprep.subr.mxu0 0.0
        %1296 = vmatpush1.xpose.msra.mxu0 0.0
        %1297 = vmatprep.subr.mxu0 0.0
        %1298 = vmatpush1.xpose.msra.mxu0 0.0
        %1299 = vmatprep.subr.mxu0 0.0
        %1300 = vmatpush1.xpose.msra.mxu0 0.0
        %1301 = vmatprep.subr.mxu0 0.0
        %1302 = vmatpush1.xpose.msra.mxu0 0.0
        %1303 = vmatprep.subr.mxu0 0.0
        %1304 = vmatpush1.xpose.msra.mxu0 0.0
        %1305 = vmatprep.subr.mxu0 0.0
        %1306 = vmatpush1.xpose.msra.mxu0 0.0
        %1307 = vmatprep.subr.mxu0 0.0
        %1308 = vmatpush1.xpose.msra.mxu0 0.0
        %1309 = vmatprep.subr.mxu0 0.0
        %1310 = vmatpush1.xpose.msra.mxu0 0.0
        %1311 = vmatprep.subr.mxu0 0.0
        %1312 = vmatpush1.xpose.msra.mxu0 0.0
        %1313 = vmatprep.subr.mxu0 0.0
        %1314 = vmatpush1.xpose.msra.mxu0 0.0
        %1315 = vmatprep.subr.mxu0 0.0
        %1316 = vmatpush1.xpose.msra.mxu0 0.0
        %1317 = vmatprep.subr.mxu0 0.0
        %1318 = vmatpush1.xpose.msra.mxu0 0.0
        %1319 = vmatprep.subr.mxu0 0.0
        %1320 = vmatpush1.xpose.msra.mxu0 0.0
        %1321 = vmatprep.subr.mxu0 0.0
        %1322 = vmatpush1.xpose.msra.mxu0 0.0
        %1323 = vmatprep.subr.mxu0 0.0
        %1324 = vmatpush1.xpose.msra.mxu0 0.0
        %1325 = vmatprep.subr.mxu0 0.0
        %1326 = vmatpush1.xpose.msra.mxu0 0.0
        %1327 = vmatprep.subr.mxu0 0.0
        %1328 = vmatpush1.xpose.msra.mxu0 0.0
        %1329 = vmatprep.subr.mxu0 0.0
        %1330 = vmatpush1.xpose.msra.mxu0 0.0
        %1331 = vmatprep.subr.mxu0 0.0
        %1332 = vmatpush1.xpose.msra.mxu0 0.0
        %1333 = vmatprep.subr.mxu0 0.0
        %1334 = vmatpush1.xpose.msra.mxu0 0.0
        %1335 = vmatprep.subr.mxu0 0.0
        %1336 = vmatpush1.xpose.msra.mxu0 0.0
        %1337 = vmatprep.subr.mxu0 0.0
        %1338 = vmatpush1.xpose.msra.mxu0 0.0
        %1339 = vmatprep.subr.mxu0 0.0
        %1340 = vmatpush1.xpose.msra.mxu0 0.0
        %1341 = vmatprep.subr.mxu0 0.0
        %1342 = vmatpush1.xpose.msra.mxu0 0.0
        %1343 = vmatprep.subr.mxu0 0.0
        %1344 = vmatpush1.xpose.msra.mxu0 0.0
        %1345 = vmatprep.subr.mxu0 0.0
        %1346 = vmatpush1.xpose.msra.mxu0 0.0
        %1347 = vmatprep.subr.mxu0 0.0
        %1348 = vmatpush1.xpose.msra.mxu0 0.0
        %1349 = vmatprep.subr.mxu0 0.0
        %1350 = vmatpush1.xpose.msra.mxu0 0.0
        %1351 = vmatprep.subr.mxu0 0.0
        %1352 = vmatpush1.xpose.msra.mxu0 0.0
        %1353 = vmatprep.mubr.f32.mxu0 0.0
        %1354 = vmatmul.mubr.f32.gmra.mrb[0].mxu0 %v1281
        %v1355 = vpop.f32.mrb[0].mxu0
        %v1356 = vadd.f32 0.0, %v1355
        %v1357 = vpop.f32.mrb[0].mxu0
        %1358 = vmatprep.mubr.f32.mxu0 0.0
        %1359 = vmatmul.mubr.f32.gmra.mrb[0].mxu0 %v1283
        %v1360 = vpop.f32.mrb[0].mxu0
        %v1361 = vadd.f32 0.0, %v1360
        %v1362 = vpop.f32.mrb[0].mxu0
        %1363 = vdwg.mxu0
        %v1364 = vsel %vm594, %v1356, -inf
        %1365 = vmax.xlane.f32.xlu0 %v1364
        %v1366 = vpop.xlane.xlu0 %1365
        %v1367 = vsel %vm594, %v1361, -inf
        %1368 = vmax.xlane.f32.xlu0 %v1367
        %v1369 = vpop.xlane.xlu0 %1368
        %v1370 = vsub.f32 %v1356, %v1366
        %v1371 = vsub.f32 %v1361, %v1369
        %v1372 = vmul.f32 %v1370, 1.442695
        %v1373 = vpow.pop %v1372
        %v1374 = vmul.f32 %v1371, 1.442695
        %v1375 = vpow.pop %v1374
        %v1376 = vsel %vm594, %v1373, 0.0
        %1377 = vadd.xlane.f32.xlu0 %v1376
        %v1378 = vpop.xlane.xlu0 %1377
        %v1379 = vsel %vm594, %v1375, 0.0
        %1380 = vadd.xlane.f32.xlu0 %v1379
        %v1381 = vpop.xlane.xlu0 %1380
        %v1382 = vrcp.pop %v1378
        %v1383 = vrcp.pop %v1381
        %1384 = vrot.lane.b32.xlu0 %v482, 32
        %v1385 = vpop.permute.xlu0 %1384
        %1386 = vrot.lane.b32.xlu0 %v485, 32
        %v1387 = vpop.permute.xlu0 %1386
        %v1391 = vsel %vm594, %v1373, 0
        %v1394 = vsel %vm594, %v1375, 0
        %1396 = vmatprep.subr.mxu0 0.0
        %1397 = vmatpush1.msra.mxu0 %v1385
        %1398 = vmatprep.subr.mxu0 0.0
        %1399 = vmatpush1.msra.mxu0 %v1387
        %1400 = vmatprep.subr.mxu0 0.0
        %1401 = vmatpush1.msra.mxu0 0.0
        %1402 = vmatprep.subr.mxu0 0.0
        %1403 = vmatpush1.msra.mxu0 0.0
        %1404 = vmatprep.subr.mxu0 0.0
        %1405 = vmatpush1.msra.mxu0 0.0
        %1406 = vmatprep.subr.mxu0 0.0
        %1407 = vmatpush1.msra.mxu0 0.0
        %1408 = vmatprep.subr.mxu0 0.0
        %1409 = vmatpush1.msra.mxu0 0.0
        %1410 = vmatprep.subr.mxu0 0.0
        %1411 = vmatpush1.msra.mxu0 0.0
        %1412 = vmatprep.subr.mxu0 0.0
        %1413 = vmatpush1.msra.mxu0 0.0
        %1414 = vmatprep.subr.mxu0 0.0
        %1415 = vmatpush1.msra.mxu0 0.0
        %1416 = vmatprep.subr.mxu0 0.0
        %1417 = vmatpush1.msra.mxu0 0.0
        %1418 = vmatprep.subr.mxu0 0.0
        %1419 = vmatpush1.msra.mxu0 0.0
        %1420 = vmatprep.subr.mxu0 0.0
        %1421 = vmatpush1.msra.mxu0 0.0
        %1422 = vmatprep.subr.mxu0 0.0
        %1423 = vmatpush1.msra.mxu0 0.0
        %1424 = vmatprep.subr.mxu0 0.0
        %1425 = vmatpush1.msra.mxu0 0.0
        %1426 = vmatprep.subr.mxu0 0.0
        %1427 = vmatpush1.msra.mxu0 0.0
        %1428 = vmatprep.subr.mxu0 0.0
        %1429 = vmatpush1.msra.mxu0 0.0
        %1430 = vmatprep.subr.mxu0 0.0
        %1431 = vmatpush1.msra.mxu0 0.0
        %1432 = vmatprep.subr.mxu0 0.0
        %1433 = vmatpush1.msra.mxu0 0.0
        %1434 = vmatprep.subr.mxu0 0.0
        %1435 = vmatpush1.msra.mxu0 0.0
        %1436 = vmatprep.subr.mxu0 0.0
        %1437 = vmatpush1.msra.mxu0 0.0
        %1438 = vmatprep.subr.mxu0 0.0
        %1439 = vmatpush1.msra.mxu0 0.0
        %1440 = vmatprep.subr.mxu0 0.0
        %1441 = vmatpush1.msra.mxu0 0.0
        %1442 = vmatprep.subr.mxu0 0.0
        %1443 = vmatpush1.msra.mxu0 0.0
        %1444 = vmatprep.subr.mxu0 0.0
        %1445 = vmatpush1.msra.mxu0 0.0
        %1446 = vmatprep.subr.mxu0 0.0
        %1447 = vmatpush1.msra.mxu0 0.0
        %1448 = vmatprep.subr.mxu0 0.0
        %1449 = vmatpush1.msra.mxu0 0.0
        %1450 = vmatprep.subr.mxu0 0.0
        %1451 = vmatpush1.msra.mxu0 0.0
        %1452 = vmatprep.subr.mxu0 0.0
        %1453 = vmatpush1.msra.mxu0 0.0
        %1454 = vmatprep.subr.mxu0 0.0
        %1455 = vmatpush1.msra.mxu0 0.0
        %1456 = vmatprep.subr.mxu0 0.0
        %1457 = vmatpush1.msra.mxu0 0.0
        %1458 = vmatprep.subr.mxu0 0.0
        %1459 = vmatpush1.msra.mxu0 0.0
        %1460 = vmatprep.mubr.f32.mxu0 0.0
        %1461 = vmatmul.mubr.f32.gmra.mrb[0].mxu0 %v1391
        %v1462 = vpop.f32.mrb[0].mxu0
        %v1463 = vadd.f32 0.0, %v1462
        %v1464 = vpop.f32.mrb[0].mxu0
        %1465 = vmatprep.mubr.f32.mxu0 0.0
        %1466 = vmatmul.mubr.f32.gmra.mrb[0].mxu0 %v1394
        %v1467 = vpop.f32.mrb[0].mxu0
        %v1468 = vadd.f32 0.0, %v1467
        %v1469 = vpop.f32.mrb[0].mxu0
        %1470 = vdwg.mxu0
        %v1471 = vmul.f32 %v1463, %v1382
        %v1472 = vmul.f32 %v1468, %v1383
        %v1473 = vpack.c.bf16 %v1472, %v1471
        %v1478 = vunpack.c.l.b16 %v500
        %v1479 = vunpack.c.l.b16 %v501
        %v1480 = vunpack.c.l.b16 %v502
        %v1481 = vunpack.c.l.b16 %v503
        %v1482 = vpack.c.b16 %v1479, %v1478
        %v1483 = vpack.c.b16 %v1481, %v1480
        %v1487 = vsel %vm506, %v1473, 0
        %1489 = vmatprep.subr.bf16.mxu0 0
        %1490 = vmatpush1.bf16.msra.mxu0 %v1482
        %1491 = vmatprep.subr.bf16.mxu0 0
        %1492 = vmatpush1.bf16.msra.mxu0 %v1483
        %1493 = vmatprep.subr.bf16.mxu0 0
        %1494 = vmatpush1.bf16.msra.mxu0 0
        %1495 = vmatprep.subr.bf16.mxu0 0
        %1496 = vmatpush1.bf16.msra.mxu0 0
        %1497 = vmatprep.subr.bf16.mxu0 0
        %1498 = vmatpush1.bf16.msra.mxu0 0
        %1499 = vmatprep.subr.bf16.mxu0 0
        %1500 = vmatpush1.bf16.msra.mxu0 0
        %1501 = vmatprep.subr.bf16.mxu0 0
        %1502 = vmatpush1.bf16.msra.mxu0 0
        %1503 = vmatprep.subr.bf16.mxu0 0
        %1504 = vmatpush1.bf16.msra.mxu0 0
        %1505 = vmatprep.subr.bf16.mxu0 0
        %1506 = vmatpush1.bf16.msra.mxu0 0
        %1507 = vmatprep.subr.bf16.mxu0 0
        %1508 = vmatpush1.bf16.msra.mxu0 0
        %1509 = vmatprep.subr.bf16.mxu0 0
        %1510 = vmatpush1.bf16.msra.mxu0 0
        %1511 = vmatprep.subr.bf16.mxu0 0
        %1512 = vmatpush1.bf16.msra.mxu0 0
        %1513 = vmatprep.subr.bf16.mxu0 0
        %1514 = vmatpush1.bf16.msra.mxu0 0
        %1515 = vmatprep.subr.bf16.mxu0 0
        %1516 = vmatpush1.bf16.msra.mxu0 0
        %1517 = vmatprep.subr.bf16.mxu0 0
        %1518 = vmatpush1.bf16.msra.mxu0 0
        %1519 = vmatprep.subr.bf16.mxu0 0
        %1520 = vmatpush1.bf16.msra.mxu0 0
        %1521 = vmatprep.mubr.bf16.mxu0 0
        %1522 = vmatmul.mubr.bf16.gmra.mrb[0].mxu0 %v1487
        %v1523 = vpop.f32.mrb[0].mxu0
        %v1524 = vadd.f32 0.0, %v1523
        %v1525 = vpop.f32.mrb[0].mxu0
        %v1526 = vpop.f32.mrb[0].mxu0
        %v1527 = vadd.f32 0.0, %v1526
        %v1528 = vpop.f32.mrb[0].mxu0
        %1529 = vdwg.mxu0
        %v1530 = vadd.f32 %v1271, %v1524
        %v1531 = vadd.f32 %v1272, %v1527
        %v1532 = vld [vmem:[%s4] sm:$0x1]
        %v1534 = vlaneseq
        %v1535 = vshrl.u32 %v1534, 7
        %v1536 = vsub.s32 0, %v1535
        %v1537 = vrot.slane %v1532, %v1536
        %v1539 = vadd.f32 %v1530, %v1537
        %v1540 = vadd.f32 %v1531, %v1537
        %1541 = vst [vmem:[%s217] sm:$0xff] %v1539
        %1542 = vst [vmem:[%s217 + $0x8] sm:$0xff] %v1540
        %s1543 = sand.u32 %s137, 1
        %s1544 = scalar_lea.sflag [#allocation3], %s1543
        %s1545 = sand.u32 %s137, 1
        %s1546 = smul.addr %s1545, 16
        %s1547 = scalar_lea.vmem [#allocation2], %s1546
        // Predicated region
        $region41: #{multi_head_attention.1} parent=39 // pred_check
          %p1548 = pneg %p147
        $region42: #{multi_head_attention.1} parent=39 // pred_check_branch
          %1550 = sbr.rel (%p1548) target = $region44
        $region43: #{multi_head_attention.1} parent=39 // pred_region
          %s1552 = ssub.s32 256, 256
          %1553 = vsyncadd %s1544, %s1552
          %s1554 = smul.addr %s19, 2
          %s1555 = smul.addr %s1554, 128
          %s1556 = scalar_lea.hbm %s5, %s1555
          %s1557 = sshll.u32 %s1547, 4
          %s1558 = int_to_ptr.vmem [resolvable:$true] %s1557
          %1563 = dma.vmem_to_hbm [thread:$0]  %s1558, 256, %s1556, %s1544, 128, 128, 8
        $region44: #{multi_head_attention.1} parent=39 // pred_fallthru
          _
      $region40: #{multi_head_attention.1} parent=5 // pred_fallthru
        _
      %p1564 = scmp.le.s32.totalorder 2, %s14
      // Predicated region
      $region45: #{multi_head_attention.1} parent=5 // pred_check
        %p1565 = pneg %p1564
      $region46: #{multi_head_attention.1} parent=5 // pred_check_branch
        %1567 = sbr.rel (%p1565) target = $region48
      $region47: #{multi_head_attention.1} parent=5 // pred_region
        %s1568 = ssub.s32 %s14, 2
        // Predicated region
        $region49: #{multi_head_attention.1} parent=47 // pred_check
          %p1569 = pneg %p153
        $region50: #{multi_head_attention.1} parent=47 // pred_check_branch
          %1571 = sbr.rel (%p1569) target = $region52
        $region51: #{multi_head_attention.1} parent=47 // pred_region
          %s1572 = sand.u32 %s138, 1
          %s1573 = scalar_lea.sflag [#allocation3], %s1572
          %s1574 = sand.u32 %s138, 1
          %s1575 = smul.addr %s1574, 16
          %s1576 = scalar_lea.vmem [#allocation2], %s1575
          %1577 = dma.done %s1573, 256
        $region52: #{multi_head_attention.1} parent=47 // pred_fallthru
          _
      $region48: #{multi_head_attention.1} parent=5 // pred_fallthru
        _
    $region6: #{multi_head_attention.1} parent=1 // loop_footer
      %s18 = sadd.s32 1, %s14
    $region7: #{multi_head_attention.1} parent=1 // loop_footer_branch
      %13 = sbr.rel target = $region3
    $region8: #{multi_head_attention.1} parent=1 // loop_exit
      _
    %1578 = vsyncpa [#allocation3], 1
    %s1579 = scalar_lea.sflag [#allocation3], 1
    %1580 = vsyncpa %s1579, 1

</llo_original>
